<compile_context>
chip_gen: v7x
topology: tpu7x:2x2x1
jax: 0.10.0
libtpu: 0.0.40
codegen_flags: <defaults>
</compile_context>

<pallas_src>
import functools

import numpy as np
import jax
import jax.numpy as jnp
from jax.experimental import pallas as pl
from jax.experimental.pallas import tpu as pltpu


# ------------------------------ fused BLSTM kernel ------------------------------
def _blstm_kernel(x_ref, wih_ref, whhf_ref, whhb_ref, b_ref, wdec_ref, bdec_ref,
                  out_ref, embed_sc, *, seq_len, batch):
    T, B = seq_len, batch
    K = whhf_ref.shape[0]
    G = 4 * K

    # ---- 1) input projection for both directions: one big MXU matmul --------
    #   columns [:G] : forward  gate pre-activations (i,f,g,o) incl. bias
    #   columns [G:] : backward gate pre-activations (i,f,g,o) incl. bias
    zx = jnp.dot(x_ref[...], wih_ref[...],
                 preferred_element_type=jnp.float32) + b_ref[...]     # (T*B, 2G)

    # hoist weight reads out of the unrolled loop
    w_hh_f = whhf_ref[...]                                            # (K, G)
    w_hh_b = whhb_ref[...]                                            # (K, G)

    def lstm_cell(z, c_prev):
        i = jax.nn.sigmoid(z[:, 0 * K:1 * K])
        f = jax.nn.sigmoid(z[:, 1 * K:2 * K])
        g = jnp.tanh(z[:, 2 * K:3 * K])
        o = jax.nn.sigmoid(z[:, 3 * K:4 * K])
        c_new = f * c_prev + i * g
        h_new = o * jnp.tanh(c_new)
        return h_new, c_new

    # ---- 2) bidirectional recurrence, fully unrolled, states live in vregs --
    h_f = jnp.zeros((B, K), jnp.float32)
    c_f = jnp.zeros((B, K), jnp.float32)
    h_b = jnp.zeros((B, K), jnp.float32)
    c_b = jnp.zeros((B, K), jnp.float32)

    for t in range(T):
        tb = T - 1 - t
        # per-step work is only h_prev @ W_hh^T + gates (x-projection hoisted)
        z_f = zx[t * B:(t + 1) * B, :G] + jnp.dot(
            h_f, w_hh_f, preferred_element_type=jnp.float32)
        h_f, c_f = lstm_cell(z_f, c_f)

        z_b = zx[tb * B:(tb + 1) * B, G:] + jnp.dot(
            h_b, w_hh_b, preferred_element_type=jnp.float32)
        h_b, c_b = lstm_cell(z_b, c_b)

        embed_sc[t * B:(t + 1) * B, :K] = h_f        # forward h for time t
        embed_sc[tb * B:(tb + 1) * B, K:] = h_b      # backward h for time T-1-t

    # ---- 3) fused Linear decoder, lane-dense (padded n_class) output --------
    out_ref[...] = jnp.dot(embed_sc[...], wdec_ref[...],
                           preferred_element_type=jnp.float32) + bdec_ref[...]


# -------------------------------- full forward ----------------------------------
def blstm_forward(x, params):
    """x: (B, T, input_size) float32 -> logits (B, T, n_class)."""
    B, T, D = x.shape
    K = params["w_hh_f"].shape[1]
    n_class = params["w_dec"].shape[0]
    n_pad = ((n_class + 127) // 128) * 128            # lane-dense decoder output

    # time-major flatten: row (t*B + b) == x[b, t]  (tiny layout plumbing in XLA)
    x_tm = jnp.transpose(x, (1, 0, 2)).reshape(T * B, D)

    # packed / transposed parameters (one-time, outside the kernel)
    w_ih = jnp.concatenate([params["w_ih_f"].T, params["w_ih_b"].T], axis=1)   # (D, 8K)
    bias = jnp.concatenate([params["b_ih_f"] + params["b_hh_f"],
                            params["b_ih_b"] + params["b_hh_b"]]).reshape(1, -1)
    w_hh_f = params["w_hh_f"].T                                                # (K, 4K)
    w_hh_b = params["w_hh_b"].T                                                # (K, 4K)
    w_dec = jnp.zeros((2 * K, n_pad), jnp.float32).at[:, :n_class].set(params["w_dec"].T)
    b_dec = jnp.zeros((1, n_pad), jnp.float32).at[:, :n_class].set(params["b_dec"])

    vmem = pl.BlockSpec(memory_space=pltpu.MemorySpace.VMEM)
    logits_pad = pl.pallas_call(
        functools.partial(_blstm_kernel, seq_len=T, batch=B),
        out_shape=jax.ShapeDtypeStruct((T * B, n_pad), jnp.float32),
        in_specs=[vmem] * 7,
        out_specs=vmem,
        scratch_shapes=[pltpu.VMEM((T * B, 2 * K), jnp.float32)],   # embed buffer
    )(x_tm, w_ih, w_hh_f, w_hh_b, bias, w_dec, b_dec)

    # back to batch-major and strip lane padding
    logits = jnp.transpose(logits_pad.reshape(T, B, n_pad), (1, 0, 2))
    return logits[:, :, :n_class]
    # TODO(synk): return_feat path (ds_ratio sum-pool of the (B,T,2K) embed) is
    # trivial plain-JAX glue and omitted since forward() defaults to
    # return_feat=False.


# ------------------------------ pure-JAX reference --------------------------------
def _lstm_ref_dir(x, w_ih, w_hh, b_ih, b_hh, reverse):
    B, T, D = x.shape
    K = w_hh.shape[1]

    def step(carry, x_t):
        h, c = carry
        z = x_t @ w_ih.T + h @ w_hh.T + b_ih + b_hh
        i, f, g, o = jnp.split(z, 4, axis=-1)
        c = jax.nn.sigmoid(f) * c + jax.nn.sigmoid(i) * jnp.tanh(g)
        h = jax.nn.sigmoid(o) * jnp.tanh(c)
        return (h, c), h

    xt = jnp.swapaxes(x, 0, 1)
    if reverse:
        xt = xt[::-1]
    _, hs = jax.lax.scan(step, (jnp.zeros((B, K)), jnp.zeros((B, K))), xt)
    if reverse:
        hs = hs[::-1]
    return jnp.swapaxes(hs, 0, 1)


def _blstm_ref(x, p):
    hf = _lstm_ref_dir(x, p["w_ih_f"], p["w_hh_f"], p["b_ih_f"], p["b_hh_f"], False)
    hb = _lstm_ref_dir(x, p["w_ih_b"], p["w_hh_b"], p["b_ih_b"], p["b_hh_b"], True)
    e = jnp.concatenate([hf, hb], axis=-1)
    return e @ p["w_dec"].T + p["b_dec"]


# ----------------------------------- main ------------------------------------------
if __name__ == "__main__":
    B, T, input_size = 2, 8, 80
    K, n_class = 32, 65            # embedding_dim, n_class

    key = jax.random.PRNGKey(0)
    ks = jax.random.split(key, 11)
    s_lstm = 1.0 / np.sqrt(K)
    s_dec = 1.0 / np.sqrt(2 * K)

    def U(k, shape, s):
        return jax.random.uniform(k, shape, jnp.float32, minval=-s, maxval=s)

    params = {
        # forward direction
        "w_ih_f": U(ks[0], (4 * K, input_size), s_lstm),
        "w_hh_f": U(ks[1], (4 * K, K), s_lstm),
        "b_ih_f": U(ks[2], (4 * K,), s_lstm),
        "b_hh_f": U(ks[3], (4 * K,), s_lstm),
        # reverse direction
        "w_ih_b": U(ks[4], (4 * K, input_size), s_lstm),
        "w_hh_b": U(ks[5], (4 * K, K), s_lstm),
        "b_ih_b": U(ks[6], (4 * K,), s_lstm),
        "b_hh_b": U(ks[7], (4 * K,), s_lstm),
        # decoder Linear(2K -> n_class)
        "w_dec": U(ks[8], (n_class, 2 * K), s_dec),
        "b_dec": U(ks[9], (n_class,), s_dec),
    }

    x = jax.random.normal(ks[10], (B, T, input_size), jnp.float32)

    logits = jax.block_until_ready(blstm_forward(x, params))
    assert logits.shape == (B, T, n_class), logits.shape

    ref = jax.block_until_ready(_blstm_ref(x, params))
    np.testing.assert_allclose(np.asarray(logits), np.asarray(ref),
                               rtol=1e-4, atol=1e-4)

    print("KERNEL_OK")
</pallas_src>

<mosaic_0001>
module attributes {stable_mosaic.version = 11 : i64} {
  func.func @_blstm_kernel(%arg0: memref<16x80xf32, #tpu.memory_space<vmem>>, %arg1: memref<80x256xf32, #tpu.memory_space<vmem>>, %arg2: memref<32x128xf32, #tpu.memory_space<vmem>>, %arg3: memref<32x128xf32, #tpu.memory_space<vmem>>, %arg4: memref<1x256xf32, #tpu.memory_space<vmem>>, %arg5: memref<64x128xf32, #tpu.memory_space<vmem>>, %arg6: memref<1x128xf32, #tpu.memory_space<vmem>>, %arg7: memref<16x128xf32, #tpu.memory_space<vmem>>, %arg8: memref<16x64xf32, #tpu.memory_space<vmem>>) attributes {dimension_semantics = [], scalar_prefetch = 0 : i64, scratch_operands = 1 : i64, tpu.core_type = #tpu.core_type<tc>} {
    %c0 = arith.constant 0 : index
    %c0_0 = arith.constant 0 : index
    %0 = vector.load %arg0[%c0, %c0_0] : memref<16x80xf32, #tpu.memory_space<vmem>>, vector<16x80xf32>
    %c0_1 = arith.constant 0 : index
    %c0_2 = arith.constant 0 : index
    %1 = vector.load %arg1[%c0_1, %c0_2] : memref<80x256xf32, #tpu.memory_space<vmem>>, vector<80x256xf32>
    %cst = arith.constant dense<0.000000e+00> : vector<16x256xf32>
    %2 = tpu.matmul %0, %1, %cst {dimension_numbers = #tpu.dot_dimension_numbers<[1], [0], [0], [1], [0, 0, 1, 1], [], []>} : vector<16x80xf32>, vector<80x256xf32>, vector<16x256xf32> -> vector<16x256xf32>
    %c0_3 = arith.constant 0 : index
    %c0_4 = arith.constant 0 : index
    %3 = vector.load %arg4[%c0_3, %c0_4] : memref<1x256xf32, #tpu.memory_space<vmem>>, vector<1x256xf32>
    %4 = vector.broadcast %3 : vector<1x256xf32> to vector<16x256xf32>
    %5 = arith.addf %2, %4 : vector<16x256xf32>
    %c0_5 = arith.constant 0 : index
    %c0_6 = arith.constant 0 : index
    %6 = vector.load %arg2[%c0_5, %c0_6] : memref<32x128xf32, #tpu.memory_space<vmem>>, vector<32x128xf32>
    %c0_7 = arith.constant 0 : index
    %c0_8 = arith.constant 0 : index
    %7 = vector.load %arg3[%c0_7, %c0_8] : memref<32x128xf32, #tpu.memory_space<vmem>>, vector<32x128xf32>
    %cst_9 = arith.constant 0.000000e+00 : f32
    %8 = vector.broadcast %cst_9 : f32 to vector<2x32xf32>
    %cst_10 = arith.constant 0.000000e+00 : f32
    %9 = vector.broadcast %cst_10 : f32 to vector<2x32xf32>
    %cst_11 = arith.constant 0.000000e+00 : f32
    %10 = vector.broadcast %cst_11 : f32 to vector<2x32xf32>
    %cst_12 = arith.constant 0.000000e+00 : f32
    %11 = vector.broadcast %cst_12 : f32 to vector<2x32xf32>
    %12 = vector.extract_strided_slice %5 {offsets = [0, 0], sizes = [2, 128], strides = [1, 1]} : vector<16x256xf32> to vector<2x128xf32>
    %cst_13 = arith.constant dense<0.000000e+00> : vector<2x128xf32>
    %13 = tpu.matmul %8, %6, %cst_13 {dimension_numbers = #tpu.dot_dimension_numbers<[1], [0], [0], [1], [0, 0, 1, 1], [], []>} : vector<2x32xf32>, vector<32x128xf32>, vector<2x128xf32> -> vector<2x128xf32>
    %14 = arith.addf %12, %13 : vector<2x128xf32>
    %15 = vector.extract_strided_slice %14 {offsets = [0, 0], sizes = [2, 32], strides = [1, 1]} : vector<2x128xf32> to vector<2x32xf32>
    %16 = arith.negf %15 : vector<2x32xf32>
    %17 = math.exp %16 : vector<2x32xf32>
    %cst_14 = arith.constant 1.000000e+00 : f32
    %18 = vector.broadcast %cst_14 : f32 to vector<2x32xf32>
    %19 = arith.addf %18, %17 : vector<2x32xf32>
    %20 = arith.divf %18, %19 : vector<2x32xf32>
    %21 = vector.extract_strided_slice %14 {offsets = [0, 32], sizes = [2, 32], strides = [1, 1]} : vector<2x128xf32> to vector<2x32xf32>
    %22 = arith.negf %21 : vector<2x32xf32>
    %23 = math.exp %22 : vector<2x32xf32>
    %cst_15 = arith.constant 1.000000e+00 : f32
    %24 = vector.broadcast %cst_15 : f32 to vector<2x32xf32>
    %25 = arith.addf %24, %23 : vector<2x32xf32>
    %26 = arith.divf %24, %25 : vector<2x32xf32>
    %27 = vector.extract_strided_slice %14 {offsets = [0, 64], sizes = [2, 32], strides = [1, 1]} : vector<2x128xf32> to vector<2x32xf32>
    %28 = math.tanh %27 : vector<2x32xf32>
    %29 = vector.extract_strided_slice %14 {offsets = [0, 96], sizes = [2, 32], strides = [1, 1]} : vector<2x128xf32> to vector<2x32xf32>
    %30 = arith.negf %29 : vector<2x32xf32>
    %31 = math.exp %30 : vector<2x32xf32>
    %cst_16 = arith.constant 1.000000e+00 : f32
    %32 = vector.broadcast %cst_16 : f32 to vector<2x32xf32>
    %33 = arith.addf %32, %31 : vector<2x32xf32>
    %34 = arith.divf %32, %33 : vector<2x32xf32>
    %35 = arith.mulf %26, %9 : vector<2x32xf32>
    %36 = arith.mulf %20, %28 : vector<2x32xf32>
    %37 = arith.addf %35, %36 : vector<2x32xf32>
    %38 = math.tanh %37 : vector<2x32xf32>
    %39 = arith.mulf %34, %38 : vector<2x32xf32>
    %40 = vector.extract_strided_slice %5 {offsets = [14, 128], sizes = [2, 128], strides = [1, 1]} : vector<16x256xf32> to vector<2x128xf32>
    %cst_17 = arith.constant dense<0.000000e+00> : vector<2x128xf32>
    %41 = tpu.matmul %10, %7, %cst_17 {dimension_numbers = #tpu.dot_dimension_numbers<[1], [0], [0], [1], [0, 0, 1, 1], [], []>} : vector<2x32xf32>, vector<32x128xf32>, vector<2x128xf32> -> vector<2x128xf32>
    %42 = arith.addf %40, %41 : vector<2x128xf32>
    %43 = vector.extract_strided_slice %42 {offsets = [0, 0], sizes = [2, 32], strides = [1, 1]} : vector<2x128xf32> to vector<2x32xf32>
    %44 = arith.negf %43 : vector<2x32xf32>
    %45 = math.exp %44 : vector<2x32xf32>
    %cst_18 = arith.constant 1.000000e+00 : f32
    %46 = vector.broadcast %cst_18 : f32 to vector<2x32xf32>
    %47 = arith.addf %46, %45 : vector<2x32xf32>
    %48 = arith.divf %46, %47 : vector<2x32xf32>
    %49 = vector.extract_strided_slice %42 {offsets = [0, 32], sizes = [2, 32], strides = [1, 1]} : vector<2x128xf32> to vector<2x32xf32>
    %50 = arith.negf %49 : vector<2x32xf32>
    %51 = math.exp %50 : vector<2x32xf32>
    %cst_19 = arith.constant 1.000000e+00 : f32
    %52 = vector.broadcast %cst_19 : f32 to vector<2x32xf32>
    %53 = arith.addf %52, %51 : vector<2x32xf32>
    %54 = arith.divf %52, %53 : vector<2x32xf32>
    %55 = vector.extract_strided_slice %42 {offsets = [0, 64], sizes = [2, 32], strides = [1, 1]} : vector<2x128xf32> to vector<2x32xf32>
    %56 = math.tanh %55 : vector<2x32xf32>
    %57 = vector.extract_strided_slice %42 {offsets = [0, 96], sizes = [2, 32], strides = [1, 1]} : vector<2x128xf32> to vector<2x32xf32>
    %58 = arith.negf %57 : vector<2x32xf32>
    %59 = math.exp %58 : vector<2x32xf32>
    %cst_20 = arith.constant 1.000000e+00 : f32
    %60 = vector.broadcast %cst_20 : f32 to vector<2x32xf32>
    %61 = arith.addf %60, %59 : vector<2x32xf32>
    %62 = arith.divf %60, %61 : vector<2x32xf32>
    %63 = arith.mulf %54, %11 : vector<2x32xf32>
    %64 = arith.mulf %48, %56 : vector<2x32xf32>
    %65 = arith.addf %63, %64 : vector<2x32xf32>
    %66 = math.tanh %65 : vector<2x32xf32>
    %67 = arith.mulf %62, %66 : vector<2x32xf32>
    %c0_21 = arith.constant 0 : index
    %c0_22 = arith.constant 0 : index
    %68 = vector.load %arg8[%c0_21, %c0_22] : memref<16x64xf32, #tpu.memory_space<vmem>>, vector<2x32xf32>
    tpu.vector_store %arg8[%c0_21, %c0_22], %39 {strides = array<i32>} : memref<16x64xf32, #tpu.memory_space<vmem>>, vector<2x32xf32>,
    %c14 = arith.constant 14 : index
    %c32 = arith.constant 32 : index
    %69 = vector.load %arg8[%c14, %c32] : memref<16x64xf32, #tpu.memory_space<vmem>>, vector<2x32xf32>
    tpu.vector_store %arg8[%c14, %c32], %67 {strides = array<i32>} : memref<16x64xf32, #tpu.memory_space<vmem>>, vector<2x32xf32>,
    %70 = vector.extract_strided_slice %5 {offsets = [2, 0], sizes = [2, 128], strides = [1, 1]} : vector<16x256xf32> to vector<2x128xf32>
    %cst_23 = arith.constant dense<0.000000e+00> : vector<2x128xf32>
    %71 = tpu.matmul %39, %6, %cst_23 {dimension_numbers = #tpu.dot_dimension_numbers<[1], [0], [0], [1], [0, 0, 1, 1], [], []>} : vector<2x32xf32>, vector<32x128xf32>, vector<2x128xf32> -> vector<2x128xf32>
    %72 = arith.addf %70, %71 : vector<2x128xf32>
    %73 = vector.extract_strided_slice %72 {offsets = [0, 0], sizes = [2, 32], strides = [1, 1]} : vector<2x128xf32> to vector<2x32xf32>
    %74 = arith.negf %73 : vector<2x32xf32>
    %75 = math.exp %74 : vector<2x32xf32>
    %cst_24 = arith.constant 1.000000e+00 : f32
    %76 = vector.broadcast %cst_24 : f32 to vector<2x32xf32>
    %77 = arith.addf %76, %75 : vector<2x32xf32>
    %78 = arith.divf %76, %77 : vector<2x32xf32>
    %79 = vector.extract_strided_slice %72 {offsets = [0, 32], sizes = [2, 32], strides = [1, 1]} : vector<2x128xf32> to vector<2x32xf32>
    %80 = arith.negf %79 : vector<2x32xf32>
    %81 = math.exp %80 : vector<2x32xf32>
    %cst_25 = arith.constant 1.000000e+00 : f32
    %82 = vector.broadcast %cst_25 : f32 to vector<2x32xf32>
    %83 = arith.addf %82, %81 : vector<2x32xf32>
    %84 = arith.divf %82, %83 : vector<2x32xf32>
    %85 = vector.extract_strided_slice %72 {offsets = [0, 64], sizes = [2, 32], strides = [1, 1]} : vector<2x128xf32> to vector<2x32xf32>
    %86 = math.tanh %85 : vector<2x32xf32>
    %87 = vector.extract_strided_slice %72 {offsets = [0, 96], sizes = [2, 32], strides = [1, 1]} : vector<2x128xf32> to vector<2x32xf32>
    %88 = arith.negf %87 : vector<2x32xf32>
    %89 = math.exp %88 : vector<2x32xf32>
    %cst_26 = arith.constant 1.000000e+00 : f32
    %90 = vector.broadcast %cst_26 : f32 to vector<2x32xf32>
    %91 = arith.addf %90, %89 : vector<2x32xf32>
    %92 = arith.divf %90, %91 : vector<2x32xf32>
    %93 = arith.mulf %84, %37 : vector<2x32xf32>
    %94 = arith.mulf %78, %86 : vector<2x32xf32>
    %95 = arith.addf %93, %94 : vector<2x32xf32>
    %96 = math.tanh %95 : vector<2x32xf32>
    %97 = arith.mulf %92, %96 : vector<2x32xf32>
    %98 = vector.extract_strided_slice %5 {offsets = [12, 128], sizes = [2, 128], strides = [1, 1]} : vector<16x256xf32> to vector<2x128xf32>
    %cst_27 = arith.constant dense<0.000000e+00> : vector<2x128xf32>
    %99 = tpu.matmul %67, %7, %cst_27 {dimension_numbers = #tpu.dot_dimension_numbers<[1], [0], [0], [1], [0, 0, 1, 1], [], []>} : vector<2x32xf32>, vector<32x128xf32>, vector<2x128xf32> -> vector<2x128xf32>
    %100 = arith.addf %98, %99 : vector<2x128xf32>
    %101 = vector.extract_strided_slice %100 {offsets = [0, 0], sizes = [2, 32], strides = [1, 1]} : vector<2x128xf32> to vector<2x32xf32>
    %102 = arith.negf %101 : vector<2x32xf32>
    %103 = math.exp %102 : vector<2x32xf32>
    %cst_28 = arith.constant 1.000000e+00 : f32
    %104 = vector.broadcast %cst_28 : f32 to vector<2x32xf32>
    %105 = arith.addf %104, %103 : vector<2x32xf32>
    %106 = arith.divf %104, %105 : vector<2x32xf32>
    %107 = vector.extract_strided_slice %100 {offsets = [0, 32], sizes = [2, 32], strides = [1, 1]} : vector<2x128xf32> to vector<2x32xf32>
    %108 = arith.negf %107 : vector<2x32xf32>
    %109 = math.exp %108 : vector<2x32xf32>
    %cst_29 = arith.constant 1.000000e+00 : f32
    %110 = vector.broadcast %cst_29 : f32 to vector<2x32xf32>
    %111 = arith.addf %110, %109 : vector<2x32xf32>
    %112 = arith.divf %110, %111 : vector<2x32xf32>
    %113 = vector.extract_strided_slice %100 {offsets = [0, 64], sizes = [2, 32], strides = [1, 1]} : vector<2x128xf32> to vector<2x32xf32>
    %114 = math.tanh %113 : vector<2x32xf32>
    %115 = vector.extract_strided_slice %100 {offsets = [0, 96], sizes = [2, 32], strides = [1, 1]} : vector<2x128xf32> to vector<2x32xf32>
    %116 = arith.negf %115 : vector<2x32xf32>
    %117 = math.exp %116 : vector<2x32xf32>
    %cst_30 = arith.constant 1.000000e+00 : f32
    %118 = vector.broadcast %cst_30 : f32 to vector<2x32xf32>
    %119 = arith.addf %118, %117 : vector<2x32xf32>
    %120 = arith.divf %118, %119 : vector<2x32xf32>
    %121 = arith.mulf %112, %65 : vector<2x32xf32>
    %122 = arith.mulf %106, %114 : vector<2x32xf32>
    %123 = arith.addf %121, %122 : vector<2x32xf32>
    %124 = math.tanh %123 : vector<2x32xf32>
    %125 = arith.mulf %120, %124 : vector<2x32xf32>
    %c2 = arith.constant 2 : index
    %c0_31 = arith.constant 0 : index
    %126 = vector.load %arg8[%c2, %c0_31] : memref<16x64xf32, #tpu.memory_space<vmem>>, vector<2x32xf32>
    tpu.vector_store %arg8[%c2, %c0_31], %97 {strides = array<i32>} : memref<16x64xf32, #tpu.memory_space<vmem>>, vector<2x32xf32>,
    %c12 = arith.constant 12 : index
    %c32_32 = arith.constant 32 : index
    %127 = vector.load %arg8[%c12, %c32_32] : memref<16x64xf32, #tpu.memory_space<vmem>>, vector<2x32xf32>
    tpu.vector_store %arg8[%c12, %c32_32], %125 {strides = array<i32>} : memref<16x64xf32, #tpu.memory_space<vmem>>, vector<2x32xf32>,
    %128 = vector.extract_strided_slice %5 {offsets = [4, 0], sizes = [2, 128], strides = [1, 1]} : vector<16x256xf32> to vector<2x128xf32>
    %cst_33 = arith.constant dense<0.000000e+00> : vector<2x128xf32>
    %129 = tpu.matmul %97, %6, %cst_33 {dimension_numbers = #tpu.dot_dimension_numbers<[1], [0], [0], [1], [0, 0, 1, 1], [], []>} : vector<2x32xf32>, vector<32x128xf32>, vector<2x128xf32> -> vector<2x128xf32>
    %130 = arith.addf %128, %129 : vector<2x128xf32>
    %131 = vector.extract_strided_slice %130 {offsets = [0, 0], sizes = [2, 32], strides = [1, 1]} : vector<2x128xf32> to vector<2x32xf32>
    %132 = arith.negf %131 : vector<2x32xf32>
    %133 = math.exp %132 : vector<2x32xf32>
    %cst_34 = arith.constant 1.000000e+00 : f32
    %134 = vector.broadcast %cst_34 : f32 to vector<2x32xf32>
    %135 = arith.addf %134, %133 : vector<2x32xf32>
    %136 = arith.divf %134, %135 : vector<2x32xf32>
    %137 = vector.extract_strided_slice %130 {offsets = [0, 32], sizes = [2, 32], strides = [1, 1]} : vector<2x128xf32> to vector<2x32xf32>
    %138 = arith.negf %137 : vector<2x32xf32>
    %139 = math.exp %138 : vector<2x32xf32>
    %cst_35 = arith.constant 1.000000e+00 : f32
    %140 = vector.broadcast %cst_35 : f32 to vector<2x32xf32>
    %141 = arith.addf %140, %139 : vector<2x32xf32>
    %142 = arith.divf %140, %141 : vector<2x32xf32>
    %143 = vector.extract_strided_slice %130 {offsets = [0, 64], sizes = [2, 32], strides = [1, 1]} : vector<2x128xf32> to vector<2x32xf32>
    %144 = math.tanh %143 : vector<2x32xf32>
    %145 = vector.extract_strided_slice %130 {offsets = [0, 96], sizes = [2, 32], strides = [1, 1]} : vector<2x128xf32> to vector<2x32xf32>
    %146 = arith.negf %145 : vector<2x32xf32>
    %147 = math.exp %146 : vector<2x32xf32>
    %cst_36 = arith.constant 1.000000e+00 : f32
    %148 = vector.broadcast %cst_36 : f32 to vector<2x32xf32>
    %149 = arith.addf %148, %147 : vector<2x32xf32>
    %150 = arith.divf %148, %149 : vector<2x32xf32>
    %151 = arith.mulf %142, %95 : vector<2x32xf32>
    %152 = arith.mulf %136, %144 : vector<2x32xf32>
    %153 = arith.addf %151, %152 : vector<2x32xf32>
    %154 = math.tanh %153 : vector<2x32xf32>
    %155 = arith.mulf %150, %154 : vector<2x32xf32>
    %156 = vector.extract_strided_slice %5 {offsets = [10, 128], sizes = [2, 128], strides = [1, 1]} : vector<16x256xf32> to vector<2x128xf32>
    %cst_37 = arith.constant dense<0.000000e+00> : vector<2x128xf32>
    %157 = tpu.matmul %125, %7, %cst_37 {dimension_numbers = #tpu.dot_dimension_numbers<[1], [0], [0], [1], [0, 0, 1, 1], [], []>} : vector<2x32xf32>, vector<32x128xf32>, vector<2x128xf32> -> vector<2x128xf32>
    %158 = arith.addf %156, %157 : vector<2x128xf32>
    %159 = vector.extract_strided_slice %158 {offsets = [0, 0], sizes = [2, 32], strides = [1, 1]} : vector<2x128xf32> to vector<2x32xf32>
    %160 = arith.negf %159 : vector<2x32xf32>
    %161 = math.exp %160 : vector<2x32xf32>
    %cst_38 = arith.constant 1.000000e+00 : f32
    %162 = vector.broadcast %cst_38 : f32 to vector<2x32xf32>
    %163 = arith.addf %162, %161 : vector<2x32xf32>
    %164 = arith.divf %162, %163 : vector<2x32xf32>
    %165 = vector.extract_strided_slice %158 {offsets = [0, 32], sizes = [2, 32], strides = [1, 1]} : vector<2x128xf32> to vector<2x32xf32>
    %166 = arith.negf %165 : vector<2x32xf32>
    %167 = math.exp %166 : vector<2x32xf32>
    %cst_39 = arith.constant 1.000000e+00 : f32
    %168 = vector.broadcast %cst_39 : f32 to vector<2x32xf32>
    %169 = arith.addf %168, %167 : vector<2x32xf32>
    %170 = arith.divf %168, %169 : vector<2x32xf32>
    %171 = vector.extract_strided_slice %158 {offsets = [0, 64], sizes = [2, 32], strides = [1, 1]} : vector<2x128xf32> to vector<2x32xf32>
    %172 = math.tanh %171 : vector<2x32xf32>
    %173 = vector.extract_strided_slice %158 {offsets = [0, 96], sizes = [2, 32], strides = [1, 1]} : vector<2x128xf32> to vector<2x32xf32>
    %174 = arith.negf %173 : vector<2x32xf32>
    %175 = math.exp %174 : vector<2x32xf32>
    %cst_40 = arith.constant 1.000000e+00 : f32
    %176 = vector.broadcast %cst_40 : f32 to vector<2x32xf32>
    %177 = arith.addf %176, %175 : vector<2x32xf32>
    %178 = arith.divf %176, %177 : vector<2x32xf32>
    %179 = arith.mulf %170, %123 : vector<2x32xf32>
    %180 = arith.mulf %164, %172 : vector<2x32xf32>
    %181 = arith.addf %179, %180 : vector<2x32xf32>
    %182 = math.tanh %181 : vector<2x32xf32>
    %183 = arith.mulf %178, %182 : vector<2x32xf32>
    %c4 = arith.constant 4 : index
    %c0_41 = arith.constant 0 : index
    %184 = vector.load %arg8[%c4, %c0_41] : memref<16x64xf32, #tpu.memory_space<vmem>>, vector<2x32xf32>
    tpu.vector_store %arg8[%c4, %c0_41], %155 {strides = array<i32>} : memref<16x64xf32, #tpu.memory_space<vmem>>, vector<2x32xf32>,
    %c10 = arith.constant 10 : index
    %c32_42 = arith.constant 32 : index
    %185 = vector.load %arg8[%c10, %c32_42] : memref<16x64xf32, #tpu.memory_space<vmem>>, vector<2x32xf32>
    tpu.vector_store %arg8[%c10, %c32_42], %183 {strides = array<i32>} : memref<16x64xf32, #tpu.memory_space<vmem>>, vector<2x32xf32>,
    %186 = vector.extract_strided_slice %5 {offsets = [6, 0], sizes = [2, 128], strides = [1, 1]} : vector<16x256xf32> to vector<2x128xf32>
    %cst_43 = arith.constant dense<0.000000e+00> : vector<2x128xf32>
    %187 = tpu.matmul %155, %6, %cst_43 {dimension_numbers = #tpu.dot_dimension_numbers<[1], [0], [0], [1], [0, 0, 1, 1], [], []>} : vector<2x32xf32>, vector<32x128xf32>, vector<2x128xf32> -> vector<2x128xf32>
    %188 = arith.addf %186, %187 : vector<2x128xf32>
    %189 = vector.extract_strided_slice %188 {offsets = [0, 0], sizes = [2, 32], strides = [1, 1]} : vector<2x128xf32> to vector<2x32xf32>
    %190 = arith.negf %189 : vector<2x32xf32>
    %191 = math.exp %190 : vector<2x32xf32>
    %cst_44 = arith.constant 1.000000e+00 : f32
    %192 = vector.broadcast %cst_44 : f32 to vector<2x32xf32>
    %193 = arith.addf %192, %191 : vector<2x32xf32>
    %194 = arith.divf %192, %193 : vector<2x32xf32>
    %195 = vector.extract_strided_slice %188 {offsets = [0, 32], sizes = [2, 32], strides = [1, 1]} : vector<2x128xf32> to vector<2x32xf32>
    %196 = arith.negf %195 : vector<2x32xf32>
    %197 = math.exp %196 : vector<2x32xf32>
    %cst_45 = arith.constant 1.000000e+00 : f32
    %198 = vector.broadcast %cst_45 : f32 to vector<2x32xf32>
    %199 = arith.addf %198, %197 : vector<2x32xf32>
    %200 = arith.divf %198, %199 : vector<2x32xf32>
    %201 = vector.extract_strided_slice %188 {offsets = [0, 64], sizes = [2, 32], strides = [1, 1]} : vector<2x128xf32> to vector<2x32xf32>
    %202 = math.tanh %201 : vector<2x32xf32>
    %203 = vector.extract_strided_slice %188 {offsets = [0, 96], sizes = [2, 32], strides = [1, 1]} : vector<2x128xf32> to vector<2x32xf32>
    %204 = arith.negf %203 : vector<2x32xf32>
    %205 = math.exp %204 : vector<2x32xf32>
    %cst_46 = arith.constant 1.000000e+00 : f32
    %206 = vector.broadcast %cst_46 : f32 to vector<2x32xf32>
    %207 = arith.addf %206, %205 : vector<2x32xf32>
    %208 = arith.divf %206, %207 : vector<2x32xf32>
    %209 = arith.mulf %200, %153 : vector<2x32xf32>
    %210 = arith.mulf %194, %202 : vector<2x32xf32>
    %211 = arith.addf %209, %210 : vector<2x32xf32>
    %212 = math.tanh %211 : vector<2x32xf32>
    %213 = arith.mulf %208, %212 : vector<2x32xf32>
    %214 = vector.extract_strided_slice %5 {offsets = [8, 128], sizes = [2, 128], strides = [1, 1]} : vector<16x256xf32> to vector<2x128xf32>
    %cst_47 = arith.constant dense<0.000000e+00> : vector<2x128xf32>
    %215 = tpu.matmul %183, %7, %cst_47 {dimension_numbers = #tpu.dot_dimension_numbers<[1], [0], [0], [1], [0, 0, 1, 1], [], []>} : vector<2x32xf32>, vector<32x128xf32>, vector<2x128xf32> -> vector<2x128xf32>
    %216 = arith.addf %214, %215 : vector<2x128xf32>
    %217 = vector.extract_strided_slice %216 {offsets = [0, 0], sizes = [2, 32], strides = [1, 1]} : vector<2x128xf32> to vector<2x32xf32>
    %218 = arith.negf %217 : vector<2x32xf32>
    %219 = math.exp %218 : vector<2x32xf32>
    %cst_48 = arith.constant 1.000000e+00 : f32
    %220 = vector.broadcast %cst_48 : f32 to vector<2x32xf32>
    %221 = arith.addf %220, %219 : vector<2x32xf32>
    %222 = arith.divf %220, %221 : vector<2x32xf32>
    %223 = vector.extract_strided_slice %216 {offsets = [0, 32], sizes = [2, 32], strides = [1, 1]} : vector<2x128xf32> to vector<2x32xf32>
    %224 = arith.negf %223 : vector<2x32xf32>
    %225 = math.exp %224 : vector<2x32xf32>
    %cst_49 = arith.constant 1.000000e+00 : f32
    %226 = vector.broadcast %cst_49 : f32 to vector<2x32xf32>
    %227 = arith.addf %226, %225 : vector<2x32xf32>
    %228 = arith.divf %226, %227 : vector<2x32xf32>
    %229 = vector.extract_strided_slice %216 {offsets = [0, 64], sizes = [2, 32], strides = [1, 1]} : vector<2x128xf32> to vector<2x32xf32>
    %230 = math.tanh %229 : vector<2x32xf32>
    %231 = vector.extract_strided_slice %216 {offsets = [0, 96], sizes = [2, 32], strides = [1, 1]} : vector<2x128xf32> to vector<2x32xf32>
    %232 = arith.negf %231 : vector<2x32xf32>
    %233 = math.exp %232 : vector<2x32xf32>
    %cst_50 = arith.constant 1.000000e+00 : f32
    %234 = vector.broadcast %cst_50 : f32 to vector<2x32xf32>
    %235 = arith.addf %234, %233 : vector<2x32xf32>
    %236 = arith.divf %234, %235 : vector<2x32xf32>
    %237 = arith.mulf %228, %181 : vector<2x32xf32>
    %238 = arith.mulf %222, %230 : vector<2x32xf32>
    %239 = arith.addf %237, %238 : vector<2x32xf32>
    %240 = math.tanh %239 : vector<2x32xf32>
    %241 = arith.mulf %236, %240 : vector<2x32xf32>
    %c6 = arith.constant 6 : index
    %c0_51 = arith.constant 0 : index
    %242 = vector.load %arg8[%c6, %c0_51] : memref<16x64xf32, #tpu.memory_space<vmem>>, vector<2x32xf32>
    tpu.vector_store %arg8[%c6, %c0_51], %213 {strides = array<i32>} : memref<16x64xf32, #tpu.memory_space<vmem>>, vector<2x32xf32>,
    %c8 = arith.constant 8 : index
    %c32_52 = arith.constant 32 : index
    %243 = vector.load %arg8[%c8, %c32_52] : memref<16x64xf32, #tpu.memory_space<vmem>>, vector<2x32xf32>
    tpu.vector_store %arg8[%c8, %c32_52], %241 {strides = array<i32>} : memref<16x64xf32, #tpu.memory_space<vmem>>, vector<2x32xf32>,
    %244 = vector.extract_strided_slice %5 {offsets = [8, 0], sizes = [2, 128], strides = [1, 1]} : vector<16x256xf32> to vector<2x128xf32>
    %cst_53 = arith.constant dense<0.000000e+00> : vector<2x128xf32>
    %245 = tpu.matmul %213, %6, %cst_53 {dimension_numbers = #tpu.dot_dimension_numbers<[1], [0], [0], [1], [0, 0, 1, 1], [], []>} : vector<2x32xf32>, vector<32x128xf32>, vector<2x128xf32> -> vector<2x128xf32>
    %246 = arith.addf %244, %245 : vector<2x128xf32>
    %247 = vector.extract_strided_slice %246 {offsets = [0, 0], sizes = [2, 32], strides = [1, 1]} : vector<2x128xf32> to vector<2x32xf32>
    %248 = arith.negf %247 : vector<2x32xf32>
    %249 = math.exp %248 : vector<2x32xf32>
    %cst_54 = arith.constant 1.000000e+00 : f32
    %250 = vector.broadcast %cst_54 : f32 to vector<2x32xf32>
    %251 = arith.addf %250, %249 : vector<2x32xf32>
    %252 = arith.divf %250, %251 : vector<2x32xf32>
    %253 = vector.extract_strided_slice %246 {offsets = [0, 32], sizes = [2, 32], strides = [1, 1]} : vector<2x128xf32> to vector<2x32xf32>
    %254 = arith.negf %253 : vector<2x32xf32>
    %255 = math.exp %254 : vector<2x32xf32>
    %cst_55 = arith.constant 1.000000e+00 : f32
    %256 = vector.broadcast %cst_55 : f32 to vector<2x32xf32>
    %257 = arith.addf %256, %255 : vector<2x32xf32>
    %258 = arith.divf %256, %257 : vector<2x32xf32>
    %259 = vector.extract_strided_slice %246 {offsets = [0, 64], sizes = [2, 32], strides = [1, 1]} : vector<2x128xf32> to vector<2x32xf32>
    %260 = math.tanh %259 : vector<2x32xf32>
    %261 = vector.extract_strided_slice %246 {offsets = [0, 96], sizes = [2, 32], strides = [1, 1]} : vector<2x128xf32> to vector<2x32xf32>
    %262 = arith.negf %261 : vector<2x32xf32>
    %263 = math.exp %262 : vector<2x32xf32>
    %cst_56 = arith.constant 1.000000e+00 : f32
    %264 = vector.broadcast %cst_56 : f32 to vector<2x32xf32>
    %265 = arith.addf %264, %263 : vector<2x32xf32>
    %266 = arith.divf %264, %265 : vector<2x32xf32>
    %267 = arith.mulf %258, %211 : vector<2x32xf32>
    %268 = arith.mulf %252, %260 : vector<2x32xf32>
    %269 = arith.addf %267, %268 : vector<2x32xf32>
    %270 = math.tanh %269 : vector<2x32xf32>
    %271 = arith.mulf %266, %270 : vector<2x32xf32>
    %272 = vector.extract_strided_slice %5 {offsets = [6, 128], sizes = [2, 128], strides = [1, 1]} : vector<16x256xf32> to vector<2x128xf32>
    %cst_57 = arith.constant dense<0.000000e+00> : vector<2x128xf32>
    %273 = tpu.matmul %241, %7, %cst_57 {dimension_numbers = #tpu.dot_dimension_numbers<[1], [0], [0], [1], [0, 0, 1, 1], [], []>} : vector<2x32xf32>, vector<32x128xf32>, vector<2x128xf32> -> vector<2x128xf32>
    %274 = arith.addf %272, %273 : vector<2x128xf32>
    %275 = vector.extract_strided_slice %274 {offsets = [0, 0], sizes = [2, 32], strides = [1, 1]} : vector<2x128xf32> to vector<2x32xf32>
    %276 = arith.negf %275 : vector<2x32xf32>
    %277 = math.exp %276 : vector<2x32xf32>
    %cst_58 = arith.constant 1.000000e+00 : f32
    %278 = vector.broadcast %cst_58 : f32 to vector<2x32xf32>
    %279 = arith.addf %278, %277 : vector<2x32xf32>
    %280 = arith.divf %278, %279 : vector<2x32xf32>
    %281 = vector.extract_strided_slice %274 {offsets = [0, 32], sizes = [2, 32], strides = [1, 1]} : vector<2x128xf32> to vector<2x32xf32>
    %282 = arith.negf %281 : vector<2x32xf32>
    %283 = math.exp %282 : vector<2x32xf32>
    %cst_59 = arith.constant 1.000000e+00 : f32
    %284 = vector.broadcast %cst_59 : f32 to vector<2x32xf32>
    %285 = arith.addf %284, %283 : vector<2x32xf32>
    %286 = arith.divf %284, %285 : vector<2x32xf32>
    %287 = vector.extract_strided_slice %274 {offsets = [0, 64], sizes = [2, 32], strides = [1, 1]} : vector<2x128xf32> to vector<2x32xf32>
    %288 = math.tanh %287 : vector<2x32xf32>
    %289 = vector.extract_strided_slice %274 {offsets = [0, 96], sizes = [2, 32], strides = [1, 1]} : vector<2x128xf32> to vector<2x32xf32>
    %290 = arith.negf %289 : vector<2x32xf32>
    %291 = math.exp %290 : vector<2x32xf32>
    %cst_60 = arith.constant 1.000000e+00 : f32
    %292 = vector.broadcast %cst_60 : f32 to vector<2x32xf32>
    %293 = arith.addf %292, %291 : vector<2x32xf32>
    %294 = arith.divf %292, %293 : vector<2x32xf32>
    %295 = arith.mulf %286, %239 : vector<2x32xf32>
    %296 = arith.mulf %280, %288 : vector<2x32xf32>
    %297 = arith.addf %295, %296 : vector<2x32xf32>
    %298 = math.tanh %297 : vector<2x32xf32>
    %299 = arith.mulf %294, %298 : vector<2x32xf32>
    %c8_61 = arith.constant 8 : index
    %c0_62 = arith.constant 0 : index
    %300 = vector.load %arg8[%c8_61, %c0_62] : memref<16x64xf32, #tpu.memory_space<vmem>>, vector<2x32xf32>
    tpu.vector_store %arg8[%c8_61, %c0_62], %271 {strides = array<i32>} : memref<16x64xf32, #tpu.memory_space<vmem>>, vector<2x32xf32>,
    %c6_63 = arith.constant 6 : index
    %c32_64 = arith.constant 32 : index
    %301 = vector.load %arg8[%c6_63, %c32_64] : memref<16x64xf32, #tpu.memory_space<vmem>>, vector<2x32xf32>
    tpu.vector_store %arg8[%c6_63, %c32_64], %299 {strides = array<i32>} : memref<16x64xf32, #tpu.memory_space<vmem>>, vector<2x32xf32>,
    %302 = vector.extract_strided_slice %5 {offsets = [10, 0], sizes = [2, 128], strides = [1, 1]} : vector<16x256xf32> to vector<2x128xf32>
    %cst_65 = arith.constant dense<0.000000e+00> : vector<2x128xf32>
    %303 = tpu.matmul %271, %6, %cst_65 {dimension_numbers = #tpu.dot_dimension_numbers<[1], [0], [0], [1], [0, 0, 1, 1], [], []>} : vector<2x32xf32>, vector<32x128xf32>, vector<2x128xf32> -> vector<2x128xf32>
    %304 = arith.addf %302, %303 : vector<2x128xf32>
    %305 = vector.extract_strided_slice %304 {offsets = [0, 0], sizes = [2, 32], strides = [1, 1]} : vector<2x128xf32> to vector<2x32xf32>
    %306 = arith.negf %305 : vector<2x32xf32>
    %307 = math.exp %306 : vector<2x32xf32>
    %cst_66 = arith.constant 1.000000e+00 : f32
    %308 = vector.broadcast %cst_66 : f32 to vector<2x32xf32>
    %309 = arith.addf %308, %307 : vector<2x32xf32>
    %310 = arith.divf %308, %309 : vector<2x32xf32>
    %311 = vector.extract_strided_slice %304 {offsets = [0, 32], sizes = [2, 32], strides = [1, 1]} : vector<2x128xf32> to vector<2x32xf32>
    %312 = arith.negf %311 : vector<2x32xf32>
    %313 = math.exp %312 : vector<2x32xf32>
    %cst_67 = arith.constant 1.000000e+00 : f32
    %314 = vector.broadcast %cst_67 : f32 to vector<2x32xf32>
    %315 = arith.addf %314, %313 : vector<2x32xf32>
    %316 = arith.divf %314, %315 : vector<2x32xf32>
    %317 = vector.extract_strided_slice %304 {offsets = [0, 64], sizes = [2, 32], strides = [1, 1]} : vector<2x128xf32> to vector<2x32xf32>
    %318 = math.tanh %317 : vector<2x32xf32>
    %319 = vector.extract_strided_slice %304 {offsets = [0, 96], sizes = [2, 32], strides = [1, 1]} : vector<2x128xf32> to vector<2x32xf32>
    %320 = arith.negf %319 : vector<2x32xf32>
    %321 = math.exp %320 : vector<2x32xf32>
    %cst_68 = arith.constant 1.000000e+00 : f32
    %322 = vector.broadcast %cst_68 : f32 to vector<2x32xf32>
    %323 = arith.addf %322, %321 : vector<2x32xf32>
    %324 = arith.divf %322, %323 : vector<2x32xf32>
    %325 = arith.mulf %316, %269 : vector<2x32xf32>
    %326 = arith.mulf %310, %318 : vector<2x32xf32>
    %327 = arith.addf %325, %326 : vector<2x32xf32>
    %328 = math.tanh %327 : vector<2x32xf32>
    %329 = arith.mulf %324, %328 : vector<2x32xf32>
    %330 = vector.extract_strided_slice %5 {offsets = [4, 128], sizes = [2, 128], strides = [1, 1]} : vector<16x256xf32> to vector<2x128xf32>
    %cst_69 = arith.constant dense<0.000000e+00> : vector<2x128xf32>
    %331 = tpu.matmul %299, %7, %cst_69 {dimension_numbers = #tpu.dot_dimension_numbers<[1], [0], [0], [1], [0, 0, 1, 1], [], []>} : vector<2x32xf32>, vector<32x128xf32>, vector<2x128xf32> -> vector<2x128xf32>
    %332 = arith.addf %330, %331 : vector<2x128xf32>
    %333 = vector.extract_strided_slice %332 {offsets = [0, 0], sizes = [2, 32], strides = [1, 1]} : vector<2x128xf32> to vector<2x32xf32>
    %334 = arith.negf %333 : vector<2x32xf32>
    %335 = math.exp %334 : vector<2x32xf32>
    %cst_70 = arith.constant 1.000000e+00 : f32
    %336 = vector.broadcast %cst_70 : f32 to vector<2x32xf32>
    %337 = arith.addf %336, %335 : vector<2x32xf32>
    %338 = arith.divf %336, %337 : vector<2x32xf32>
    %339 = vector.extract_strided_slice %332 {offsets = [0, 32], sizes = [2, 32], strides = [1, 1]} : vector<2x128xf32> to vector<2x32xf32>
    %340 = arith.negf %339 : vector<2x32xf32>
    %341 = math.exp %340 : vector<2x32xf32>
    %cst_71 = arith.constant 1.000000e+00 : f32
    %342 = vector.broadcast %cst_71 : f32 to vector<2x32xf32>
    %343 = arith.addf %342, %341 : vector<2x32xf32>
    %344 = arith.divf %342, %343 : vector<2x32xf32>
    %345 = vector.extract_strided_slice %332 {offsets = [0, 64], sizes = [2, 32], strides = [1, 1]} : vector<2x128xf32> to vector<2x32xf32>
    %346 = math.tanh %345 : vector<2x32xf32>
    %347 = vector.extract_strided_slice %332 {offsets = [0, 96], sizes = [2, 32], strides = [1, 1]} : vector<2x128xf32> to vector<2x32xf32>
    %348 = arith.negf %347 : vector<2x32xf32>
    %349 = math.exp %348 : vector<2x32xf32>
    %cst_72 = arith.constant 1.000000e+00 : f32
    %350 = vector.broadcast %cst_72 : f32 to vector<2x32xf32>
    %351 = arith.addf %350, %349 : vector<2x32xf32>
    %352 = arith.divf %350, %351 : vector<2x32xf32>
    %353 = arith.mulf %344, %297 : vector<2x32xf32>
    %354 = arith.mulf %338, %346 : vector<2x32xf32>
    %355 = arith.addf %353, %354 : vector<2x32xf32>
    %356 = math.tanh %355 : vector<2x32xf32>
    %357 = arith.mulf %352, %356 : vector<2x32xf32>
    %c10_73 = arith.constant 10 : index
    %c0_74 = arith.constant 0 : index
    %358 = vector.load %arg8[%c10_73, %c0_74] : memref<16x64xf32, #tpu.memory_space<vmem>>, vector<2x32xf32>
    tpu.vector_store %arg8[%c10_73, %c0_74], %329 {strides = array<i32>} : memref<16x64xf32, #tpu.memory_space<vmem>>, vector<2x32xf32>,
    %c4_75 = arith.constant 4 : index
    %c32_76 = arith.constant 32 : index
    %359 = vector.load %arg8[%c4_75, %c32_76] : memref<16x64xf32, #tpu.memory_space<vmem>>, vector<2x32xf32>
    tpu.vector_store %arg8[%c4_75, %c32_76], %357 {strides = array<i32>} : memref<16x64xf32, #tpu.memory_space<vmem>>, vector<2x32xf32>,
    %360 = vector.extract_strided_slice %5 {offsets = [12, 0], sizes = [2, 128], strides = [1, 1]} : vector<16x256xf32> to vector<2x128xf32>
    %cst_77 = arith.constant dense<0.000000e+00> : vector<2x128xf32>
    %361 = tpu.matmul %329, %6, %cst_77 {dimension_numbers = #tpu.dot_dimension_numbers<[1], [0], [0], [1], [0, 0, 1, 1], [], []>} : vector<2x32xf32>, vector<32x128xf32>, vector<2x128xf32> -> vector<2x128xf32>
    %362 = arith.addf %360, %361 : vector<2x128xf32>
    %363 = vector.extract_strided_slice %362 {offsets = [0, 0], sizes = [2, 32], strides = [1, 1]} : vector<2x128xf32> to vector<2x32xf32>
    %364 = arith.negf %363 : vector<2x32xf32>
    %365 = math.exp %364 : vector<2x32xf32>
    %cst_78 = arith.constant 1.000000e+00 : f32
    %366 = vector.broadcast %cst_78 : f32 to vector<2x32xf32>
    %367 = arith.addf %366, %365 : vector<2x32xf32>
    %368 = arith.divf %366, %367 : vector<2x32xf32>
    %369 = vector.extract_strided_slice %362 {offsets = [0, 32], sizes = [2, 32], strides = [1, 1]} : vector<2x128xf32> to vector<2x32xf32>
    %370 = arith.negf %369 : vector<2x32xf32>
    %371 = math.exp %370 : vector<2x32xf32>
    %cst_79 = arith.constant 1.000000e+00 : f32
    %372 = vector.broadcast %cst_79 : f32 to vector<2x32xf32>
    %373 = arith.addf %372, %371 : vector<2x32xf32>
    %374 = arith.divf %372, %373 : vector<2x32xf32>
    %375 = vector.extract_strided_slice %362 {offsets = [0, 64], sizes = [2, 32], strides = [1, 1]} : vector<2x128xf32> to vector<2x32xf32>
    %376 = math.tanh %375 : vector<2x32xf32>
    %377 = vector.extract_strided_slice %362 {offsets = [0, 96], sizes = [2, 32], strides = [1, 1]} : vector<2x128xf32> to vector<2x32xf32>
    %378 = arith.negf %377 : vector<2x32xf32>
    %379 = math.exp %378 : vector<2x32xf32>
    %cst_80 = arith.constant 1.000000e+00 : f32
    %380 = vector.broadcast %cst_80 : f32 to vector<2x32xf32>
    %381 = arith.addf %380, %379 : vector<2x32xf32>
    %382 = arith.divf %380, %381 : vector<2x32xf32>
    %383 = arith.mulf %374, %327 : vector<2x32xf32>
    %384 = arith.mulf %368, %376 : vector<2x32xf32>
    %385 = arith.addf %383, %384 : vector<2x32xf32>
    %386 = math.tanh %385 : vector<2x32xf32>
    %387 = arith.mulf %382, %386 : vector<2x32xf32>
    %388 = vector.extract_strided_slice %5 {offsets = [2, 128], sizes = [2, 128], strides = [1, 1]} : vector<16x256xf32> to vector<2x128xf32>
    %cst_81 = arith.constant dense<0.000000e+00> : vector<2x128xf32>
    %389 = tpu.matmul %357, %7, %cst_81 {dimension_numbers = #tpu.dot_dimension_numbers<[1], [0], [0], [1], [0, 0, 1, 1], [], []>} : vector<2x32xf32>, vector<32x128xf32>, vector<2x128xf32> -> vector<2x128xf32>
    %390 = arith.addf %388, %389 : vector<2x128xf32>
    %391 = vector.extract_strided_slice %390 {offsets = [0, 0], sizes = [2, 32], strides = [1, 1]} : vector<2x128xf32> to vector<2x32xf32>
    %392 = arith.negf %391 : vector<2x32xf32>
    %393 = math.exp %392 : vector<2x32xf32>
    %cst_82 = arith.constant 1.000000e+00 : f32
    %394 = vector.broadcast %cst_82 : f32 to vector<2x32xf32>
    %395 = arith.addf %394, %393 : vector<2x32xf32>
    %396 = arith.divf %394, %395 : vector<2x32xf32>
    %397 = vector.extract_strided_slice %390 {offsets = [0, 32], sizes = [2, 32], strides = [1, 1]} : vector<2x128xf32> to vector<2x32xf32>
    %398 = arith.negf %397 : vector<2x32xf32>
    %399 = math.exp %398 : vector<2x32xf32>
    %cst_83 = arith.constant 1.000000e+00 : f32
    %400 = vector.broadcast %cst_83 : f32 to vector<2x32xf32>
    %401 = arith.addf %400, %399 : vector<2x32xf32>
    %402 = arith.divf %400, %401 : vector<2x32xf32>
    %403 = vector.extract_strided_slice %390 {offsets = [0, 64], sizes = [2, 32], strides = [1, 1]} : vector<2x128xf32> to vector<2x32xf32>
    %404 = math.tanh %403 : vector<2x32xf32>
    %405 = vector.extract_strided_slice %390 {offsets = [0, 96], sizes = [2, 32], strides = [1, 1]} : vector<2x128xf32> to vector<2x32xf32>
    %406 = arith.negf %405 : vector<2x32xf32>
    %407 = math.exp %406 : vector<2x32xf32>
    %cst_84 = arith.constant 1.000000e+00 : f32
    %408 = vector.broadcast %cst_84 : f32 to vector<2x32xf32>
    %409 = arith.addf %408, %407 : vector<2x32xf32>
    %410 = arith.divf %408, %409 : vector<2x32xf32>
    %411 = arith.mulf %402, %355 : vector<2x32xf32>
    %412 = arith.mulf %396, %404 : vector<2x32xf32>
    %413 = arith.addf %411, %412 : vector<2x32xf32>
    %414 = math.tanh %413 : vector<2x32xf32>
    %415 = arith.mulf %410, %414 : vector<2x32xf32>
    %c12_85 = arith.constant 12 : index
    %c0_86 = arith.constant 0 : index
    %416 = vector.load %arg8[%c12_85, %c0_86] : memref<16x64xf32, #tpu.memory_space<vmem>>, vector<2x32xf32>
    tpu.vector_store %arg8[%c12_85, %c0_86], %387 {strides = array<i32>} : memref<16x64xf32, #tpu.memory_space<vmem>>, vector<2x32xf32>,
    %c2_87 = arith.constant 2 : index
    %c32_88 = arith.constant 32 : index
    %417 = vector.load %arg8[%c2_87, %c32_88] : memref<16x64xf32, #tpu.memory_space<vmem>>, vector<2x32xf32>
    tpu.vector_store %arg8[%c2_87, %c32_88], %415 {strides = array<i32>} : memref<16x64xf32, #tpu.memory_space<vmem>>, vector<2x32xf32>,
    %418 = vector.extract_strided_slice %5 {offsets = [14, 0], sizes = [2, 128], strides = [1, 1]} : vector<16x256xf32> to vector<2x128xf32>
    %cst_89 = arith.constant dense<0.000000e+00> : vector<2x128xf32>
    %419 = tpu.matmul %387, %6, %cst_89 {dimension_numbers = #tpu.dot_dimension_numbers<[1], [0], [0], [1], [0, 0, 1, 1], [], []>} : vector<2x32xf32>, vector<32x128xf32>, vector<2x128xf32> -> vector<2x128xf32>
    %420 = arith.addf %418, %419 : vector<2x128xf32>
    %421 = vector.extract_strided_slice %420 {offsets = [0, 0], sizes = [2, 32], strides = [1, 1]} : vector<2x128xf32> to vector<2x32xf32>
    %422 = arith.negf %421 : vector<2x32xf32>
    %423 = math.exp %422 : vector<2x32xf32>
    %cst_90 = arith.constant 1.000000e+00 : f32
    %424 = vector.broadcast %cst_90 : f32 to vector<2x32xf32>
    %425 = arith.addf %424, %423 : vector<2x32xf32>
    %426 = arith.divf %424, %425 : vector<2x32xf32>
    %427 = vector.extract_strided_slice %420 {offsets = [0, 32], sizes = [2, 32], strides = [1, 1]} : vector<2x128xf32> to vector<2x32xf32>
    %428 = arith.negf %427 : vector<2x32xf32>
    %429 = math.exp %428 : vector<2x32xf32>
    %cst_91 = arith.constant 1.000000e+00 : f32
    %430 = vector.broadcast %cst_91 : f32 to vector<2x32xf32>
    %431 = arith.addf %430, %429 : vector<2x32xf32>
    %432 = arith.divf %430, %431 : vector<2x32xf32>
    %433 = vector.extract_strided_slice %420 {offsets = [0, 64], sizes = [2, 32], strides = [1, 1]} : vector<2x128xf32> to vector<2x32xf32>
    %434 = math.tanh %433 : vector<2x32xf32>
    %435 = vector.extract_strided_slice %420 {offsets = [0, 96], sizes = [2, 32], strides = [1, 1]} : vector<2x128xf32> to vector<2x32xf32>
    %436 = arith.negf %435 : vector<2x32xf32>
    %437 = math.exp %436 : vector<2x32xf32>
    %cst_92 = arith.constant 1.000000e+00 : f32
    %438 = vector.broadcast %cst_92 : f32 to vector<2x32xf32>
    %439 = arith.addf %438, %437 : vector<2x32xf32>
    %440 = arith.divf %438, %439 : vector<2x32xf32>
    %441 = arith.mulf %432, %385 : vector<2x32xf32>
    %442 = arith.mulf %426, %434 : vector<2x32xf32>
    %443 = arith.addf %441, %442 : vector<2x32xf32>
    %444 = math.tanh %443 : vector<2x32xf32>
    %445 = arith.mulf %440, %444 : vector<2x32xf32>
    %446 = vector.extract_strided_slice %5 {offsets = [0, 128], sizes = [2, 128], strides = [1, 1]} : vector<16x256xf32> to vector<2x128xf32>
    %cst_93 = arith.constant dense<0.000000e+00> : vector<2x128xf32>
    %447 = tpu.matmul %415, %7, %cst_93 {dimension_numbers = #tpu.dot_dimension_numbers<[1], [0], [0], [1], [0, 0, 1, 1], [], []>} : vector<2x32xf32>, vector<32x128xf32>, vector<2x128xf32> -> vector<2x128xf32>
    %448 = arith.addf %446, %447 : vector<2x128xf32>
    %449 = vector.extract_strided_slice %448 {offsets = [0, 0], sizes = [2, 32], strides = [1, 1]} : vector<2x128xf32> to vector<2x32xf32>
    %450 = arith.negf %449 : vector<2x32xf32>
    %451 = math.exp %450 : vector<2x32xf32>
    %cst_94 = arith.constant 1.000000e+00 : f32
    %452 = vector.broadcast %cst_94 : f32 to vector<2x32xf32>
    %453 = arith.addf %452, %451 : vector<2x32xf32>
    %454 = arith.divf %452, %453 : vector<2x32xf32>
    %455 = vector.extract_strided_slice %448 {offsets = [0, 32], sizes = [2, 32], strides = [1, 1]} : vector<2x128xf32> to vector<2x32xf32>
    %456 = arith.negf %455 : vector<2x32xf32>
    %457 = math.exp %456 : vector<2x32xf32>
    %cst_95 = arith.constant 1.000000e+00 : f32
    %458 = vector.broadcast %cst_95 : f32 to vector<2x32xf32>
    %459 = arith.addf %458, %457 : vector<2x32xf32>
    %460 = arith.divf %458, %459 : vector<2x32xf32>
    %461 = vector.extract_strided_slice %448 {offsets = [0, 64], sizes = [2, 32], strides = [1, 1]} : vector<2x128xf32> to vector<2x32xf32>
    %462 = math.tanh %461 : vector<2x32xf32>
    %463 = vector.extract_strided_slice %448 {offsets = [0, 96], sizes = [2, 32], strides = [1, 1]} : vector<2x128xf32> to vector<2x32xf32>
    %464 = arith.negf %463 : vector<2x32xf32>
    %465 = math.exp %464 : vector<2x32xf32>
    %cst_96 = arith.constant 1.000000e+00 : f32
    %466 = vector.broadcast %cst_96 : f32 to vector<2x32xf32>
    %467 = arith.addf %466, %465 : vector<2x32xf32>
    %468 = arith.divf %466, %467 : vector<2x32xf32>
    %469 = arith.mulf %460, %413 : vector<2x32xf32>
    %470 = arith.mulf %454, %462 : vector<2x32xf32>
    %471 = arith.addf %469, %470 : vector<2x32xf32>
    %472 = math.tanh %471 : vector<2x32xf32>
    %473 = arith.mulf %468, %472 : vector<2x32xf32>
    %c14_97 = arith.constant 14 : index
    %c0_98 = arith.constant 0 : index
    %474 = vector.load %arg8[%c14_97, %c0_98] : memref<16x64xf32, #tpu.memory_space<vmem>>, vector<2x32xf32>
    tpu.vector_store %arg8[%c14_97, %c0_98], %445 {strides = array<i32>} : memref<16x64xf32, #tpu.memory_space<vmem>>, vector<2x32xf32>,
    %c0_99 = arith.constant 0 : index
    %c32_100 = arith.constant 32 : index
    %475 = vector.load %arg8[%c0_99, %c32_100] : memref<16x64xf32, #tpu.memory_space<vmem>>, vector<2x32xf32>
    tpu.vector_store %arg8[%c0_99, %c32_100], %473 {strides = array<i32>} : memref<16x64xf32, #tpu.memory_space<vmem>>, vector<2x32xf32>,
    %c0_101 = arith.constant 0 : index
    %c0_102 = arith.constant 0 : index
    %476 = vector.load %arg8[%c0_101, %c0_102] : memref<16x64xf32, #tpu.memory_space<vmem>>, vector<16x64xf32>
    %c0_103 = arith.constant 0 : index
    %c0_104 = arith.constant 0 : index
    %477 = vector.load %arg5[%c0_103, %c0_104] : memref<64x128xf32, #tpu.memory_space<vmem>>, vector<64x128xf32>
    %cst_105 = arith.constant dense<0.000000e+00> : vector<16x128xf32>
    %478 = tpu.matmul %476, %477, %cst_105 {dimension_numbers = #tpu.dot_dimension_numbers<[1], [0], [0], [1], [0, 0, 1, 1], [], []>} : vector<16x64xf32>, vector<64x128xf32>, vector<16x128xf32> -> vector<16x128xf32>
    %c0_106 = arith.constant 0 : index
    %c0_107 = arith.constant 0 : index
    %479 = vector.load %arg6[%c0_106, %c0_107] : memref<1x128xf32, #tpu.memory_space<vmem>>, vector<1x128xf32>
    %480 = vector.broadcast %479 : vector<1x128xf32> to vector<16x128xf32>
    %481 = arith.addf %478, %480 : vector<16x128xf32>
    %c0_108 = arith.constant 0 : index
    %c0_109 = arith.constant 0 : index
    %482 = vector.load %arg7[%c0_108, %c0_109] : memref<16x128xf32, #tpu.memory_space<vmem>>, vector<16x128xf32>
    tpu.vector_store %arg7[%c0_108, %c0_109], %481 {strides = array<i32>} : memref<16x128xf32, #tpu.memory_space<vmem>>, vector<16x128xf32>,
    return
  }
}

</mosaic_0001>

<llo_original>
// kernel: tpu_custom_call.1
$region0: #{tpu_custom_call.1}
  #allocation0 [shape = 'u32[]', space=smem, size = 0x4, offset = 0x4, fixed_abs, tag = 'smem constant byte address 0x4 - core index']
  #allocation1 [shape = 'u32[144,128]{1,0:T(1,128)}', space=vmem, size = 0x12000, scoped, tag = 'internal scratch']
  #allocation2 [shape = 'f32[16,64]{1,0:T(8,128)}', space=vmem, size = 0x2000, scoped, tag = 'scratch operand']
  %s0 = inlined_call_operand.hbm [shape: f32[16,80], index: 0, kind: input, shape index: {}]
  %s1 = inlined_call_operand.hbm [shape: f32[80,256], index: 1, kind: input, shape index: {}]
  %s2 = inlined_call_operand.hbm [shape: f32[32,128], index: 2, kind: input, shape index: {}]
  %s3 = inlined_call_operand.hbm [shape: f32[32,128], index: 3, kind: input, shape index: {}]
  %s4 = inlined_call_operand.vmem [shape: f32[1,256], index: 4, kind: input, shape index: {}]
  %s5 = inlined_call_operand.hbm [shape: f32[64,128], index: 5, kind: input, shape index: {}]
  %s6 = inlined_call_operand.vmem [shape: f32[1,128], index: 6, kind: input, shape index: {}]
  %s7 = inlined_call_operand.hbm [shape: f32[16,128], index: 7, kind: output, shape index: {}]
  %s8 = sld [smem:[#allocation0]]
  $region58: #{tpu_custom_call.1} parent=0
    _
  %s10 = ssub.s32 1, %s8
  %s11 = scalar_select 0, %s10, %s8
  $region1: #{tpu_custom_call.1} parent=0
    #allocation3 [shape = 'u8[8192]{0}', space=vmem, size = 0x2000, scoped, tag = 'input window, operand 0, single buffered']
    #allocation4 [shape = 's32[1]{0}', space=sflag, size = 0x4, scoped, tag = 'scoped memory for tpu_custom_call.1']
    #allocation5 [shape = 's32[1]{0}', space=sflag, size = 0x4, scoped, tag = 'scoped memory for tpu_custom_call.1']
    #allocation6 [shape = 'u8[81920]{0}', space=vmem, size = 0x14000, scoped, tag = 'input window, operand 1, single buffered']
    #allocation7 [shape = 's32[1]{0}', space=sflag, size = 0x4, scoped, tag = 'scoped memory for tpu_custom_call.1']
    #allocation8 [shape = 'u8[16384]{0}', space=vmem, size = 0x4000, scoped, tag = 'input window, operand 2, single buffered']
    #allocation9 [shape = 'u8[16384]{0}', space=vmem, size = 0x4000, scoped, tag = 'input window, operand 3, single buffered']
    #allocation10 [shape = 's32[1]{0}', space=sflag, size = 0x4, scoped, tag = 'scoped memory for tpu_custom_call.1']
    #allocation11 [shape = 'u8[32768]{0}', space=vmem, size = 0x8000, scoped, tag = 'input window, operand 5, single buffered']
    #allocation12 [shape = 'u8[8192]{0}', space=vmem, size = 0x2000, scoped, tag = 'output window, operand 0, single buffered']
    %12 = vsyncpa [#allocation4], 0
    %13 = vsyncpa [#allocation7], 0
    %14 = vsyncpa [#allocation10], 0
    %15 = vsyncpa [#allocation5], 0
    // Predicated region
    $region2: #{tpu_custom_call.1} parent=1 // pred_check
      _
    $region3: #{tpu_custom_call.1} parent=1 // pred_check_branch
      %17 = sbr.rel (0) target = $region5
    $region4: #{tpu_custom_call.1} parent=1 // pred_region
      %s19 = ssub.s32 256, 256
      %20 = vsyncadd [#allocation4], %s19
      %s21 = sshll.u32 [#allocation3], 4
      %s22 = int_to_ptr.vmem [resolvable:$true] %s21
      %27 = dma.hbm_to_vmem [thread:$0]  %s0, 256, %s22, [#allocation4], 128, 128, 8
    $region5: #{tpu_custom_call.1} parent=1 // pred_fallthru
      _
    // Predicated region
    $region6: #{tpu_custom_call.1} parent=1 // pred_check
      _
    $region7: #{tpu_custom_call.1} parent=1 // pred_check_branch
      %29 = sbr.rel (0) target = $region9
    $region8: #{tpu_custom_call.1} parent=1 // pred_region
      %s31 = ssub.s32 2560, 2560
      %32 = vsyncadd [#allocation7], %s31
      %s33 = sshll.u32 [#allocation6], 4
      %s34 = int_to_ptr.vmem [resolvable:$true] %s33
      %39 = dma.hbm_to_vmem [thread:$0]  %s1, 2560, %s34, [#allocation7], 256, 256, 16
    $region9: #{tpu_custom_call.1} parent=1 // pred_fallthru
      _
    // Predicated region
    $region10: #{tpu_custom_call.1} parent=1 // pred_check
      _
    $region11: #{tpu_custom_call.1} parent=1 // pred_check_branch
      %41 = sbr.rel (0) target = $region13
    $region12: #{tpu_custom_call.1} parent=1 // pred_region
      %s43 = ssub.s32 512, 512
      %44 = vsyncadd [#allocation7], %s43
      %s45 = sshll.u32 [#allocation8], 4
      %s46 = int_to_ptr.vmem [resolvable:$true] %s45
      %51 = dma.hbm_to_vmem [thread:$0]  %s2, 512, %s46, [#allocation7], 128, 128, 8
    $region13: #{tpu_custom_call.1} parent=1 // pred_fallthru
      _
    // Predicated region
    $region14: #{tpu_custom_call.1} parent=1 // pred_check
      _
    $region15: #{tpu_custom_call.1} parent=1 // pred_check_branch
      %53 = sbr.rel (0) target = $region17
    $region16: #{tpu_custom_call.1} parent=1 // pred_region
      %s55 = ssub.s32 512, 512
      %56 = vsyncadd [#allocation10], %s55
      %s57 = sshll.u32 [#allocation9], 4
      %s58 = int_to_ptr.vmem [resolvable:$true] %s57
      %63 = dma.hbm_to_vmem [thread:$0]  %s3, 512, %s58, [#allocation10], 128, 128, 8
    $region17: #{tpu_custom_call.1} parent=1 // pred_fallthru
      _
    // Predicated region
    $region18: #{tpu_custom_call.1} parent=1 // pred_check
      _
    $region19: #{tpu_custom_call.1} parent=1 // pred_check_branch
      %65 = sbr.rel (0) target = $region21
    $region20: #{tpu_custom_call.1} parent=1 // pred_region
      _
    $region21: #{tpu_custom_call.1} parent=1 // pred_fallthru
      _
    // Predicated region
    $region22: #{tpu_custom_call.1} parent=1 // pred_check
      _
    $region23: #{tpu_custom_call.1} parent=1 // pred_check_branch
      %67 = sbr.rel (0) target = $region25
    $region24: #{tpu_custom_call.1} parent=1 // pred_region
      %s69 = ssub.s32 1024, 1024
      %70 = vsyncadd [#allocation10], %s69
      %s71 = sshll.u32 [#allocation11], 4
      %s72 = int_to_ptr.vmem [resolvable:$true] %s71
      %77 = dma.hbm_to_vmem [thread:$0]  %s5, 1024, %s72, [#allocation10], 128, 128, 8
    $region25: #{tpu_custom_call.1} parent=1 // pred_fallthru
      _
    // Predicated region
    $region26: #{tpu_custom_call.1} parent=1 // pred_check
      _
    $region27: #{tpu_custom_call.1} parent=1 // pred_check_branch
      %79 = sbr.rel (0) target = $region29
    $region28: #{tpu_custom_call.1} parent=1 // pred_region
      _
    $region29: #{tpu_custom_call.1} parent=1 // pred_fallthru
      _
    // Predicated region
    $region30: #{tpu_custom_call.1} parent=1 // pred_check
      _
    $region31: #{tpu_custom_call.1} parent=1 // pred_check_branch
      %81 = sbr.rel (0) target = $region33
    $region32: #{tpu_custom_call.1} parent=1 // pred_region
      %82 = dma.done [#allocation4], 256
    $region33: #{tpu_custom_call.1} parent=1 // pred_fallthru
      _
    // Predicated region
    $region34: #{tpu_custom_call.1} parent=1 // pred_check
      _
    $region35: #{tpu_custom_call.1} parent=1 // pred_check_branch
      %84 = sbr.rel (0) target = $region37
    $region36: #{tpu_custom_call.1} parent=1 // pred_region
      %85 = dma.done [#allocation7], 2560
    $region37: #{tpu_custom_call.1} parent=1 // pred_fallthru
      _
    // Predicated region
    $region38: #{tpu_custom_call.1} parent=1 // pred_check
      _
    $region39: #{tpu_custom_call.1} parent=1 // pred_check_branch
      %87 = sbr.rel (0) target = $region41
    $region40: #{tpu_custom_call.1} parent=1 // pred_region
      %88 = dma.done [#allocation7], 512
    $region41: #{tpu_custom_call.1} parent=1 // pred_fallthru
      _
    // Predicated region
    $region42: #{tpu_custom_call.1} parent=1 // pred_check
      _
    $region43: #{tpu_custom_call.1} parent=1 // pred_check_branch
      %90 = sbr.rel (0) target = $region45
    $region44: #{tpu_custom_call.1} parent=1 // pred_region
      %91 = dma.done [#allocation10], 512
    $region45: #{tpu_custom_call.1} parent=1 // pred_fallthru
      _
    // Predicated region
    $region46: #{tpu_custom_call.1} parent=1 // pred_check
      _
    $region47: #{tpu_custom_call.1} parent=1 // pred_check_branch
      %93 = sbr.rel (0) target = $region49
    $region48: #{tpu_custom_call.1} parent=1 // pred_region
      %94 = dma.done [#allocation10], 1024
    $region49: #{tpu_custom_call.1} parent=1 // pred_fallthru
      _
    %v95 = vld [vmem:[#allocation3] sm:$0xff]
    %v96 = vld [vmem:[#allocation3 + $0x8] sm:$0xff]
    %v97 = vld [vmem:[#allocation6] sm:$0xff]
    %v98 = vld [vmem:[#allocation6 + $0x8] sm:$0xff]
    %v99 = vld [vmem:[#allocation6 + $0x10] sm:$0xff]
    %v100 = vld [vmem:[#allocation6 + $0x18] sm:$0xff]
    %v101 = vld [vmem:[#allocation6 + $0x20] sm:$0xff]
    %v102 = vld [vmem:[#allocation6 + $0x28] sm:$0xff]
    %v103 = vld [vmem:[#allocation6 + $0x30] sm:$0xff]
    %v104 = vld [vmem:[#allocation6 + $0x38] sm:$0xff]
    %v105 = vld [vmem:[#allocation6 + $0x40] sm:$0xff]
    %v106 = vld [vmem:[#allocation6 + $0x48] sm:$0xff]
    %v107 = vld [vmem:[#allocation6 + $0x50] sm:$0xff]
    %v108 = vld [vmem:[#allocation6 + $0x58] sm:$0xff]
    %v109 = vld [vmem:[#allocation6 + $0x60] sm:$0xff]
    %v110 = vld [vmem:[#allocation6 + $0x68] sm:$0xff]
    %v111 = vld [vmem:[#allocation6 + $0x70] sm:$0xff]
    %v112 = vld [vmem:[#allocation6 + $0x78] sm:$0xff]
    %v113 = vld [vmem:[#allocation6 + $0x80] sm:$0xff]
    %v114 = vld [vmem:[#allocation6 + $0x88] sm:$0xff]
    %v115 = vld [vmem:[#allocation6 + $0x90] sm:$0xff]
    %v116 = vld [vmem:[#allocation6 + $0x98] sm:$0xff]
    %v117 = vld [vmem:[%s4] sm:$0x3]
    %v119 = vlaneseq
    %v120 = vshrl.u32 %v119, 7
    %v121 = vsub.s32 0, %v120
    %v122 = vrot.slane %v117, %v121
    %v123 = vlaneseq
    %v124 = vshrl.u32 %v123, 7
    %v125 = vsub.s32 1, %v124
    %v126 = vrot.slane %v117, %v125
    %vm129 = vcmask 654336
    %v131 = vsel %vm129, %v95, 0
    %v134 = vsel %vm129, %v96, 0
    %136 = vmatprep.subr.mxu0 %v98
    %137 = vmatpush1.msra.mxu0 %v97
    %138 = vmatprep.subr.mxu0 %v100
    %139 = vmatpush1.msra.mxu0 %v99
    %140 = vmatprep.subr.mxu0 %v102
    %141 = vmatpush1.msra.mxu0 %v101
    %142 = vmatprep.subr.mxu0 %v104
    %143 = vmatpush1.msra.mxu0 %v103
    %144 = vmatprep.subr.mxu0 %v106
    %145 = vmatpush1.msra.mxu0 %v105
    %146 = vmatprep.subr.mxu0 %v108
    %147 = vmatpush1.msra.mxu0 %v107
    %148 = vmatprep.subr.mxu0 %v110
    %149 = vmatpush1.msra.mxu0 %v109
    %150 = vmatprep.subr.mxu0 %v112
    %151 = vmatpush1.msra.mxu0 %v111
    %152 = vmatprep.subr.mxu0 %v114
    %153 = vmatpush1.msra.mxu0 %v113
    %154 = vmatprep.subr.mxu0 %v116
    %155 = vmatpush1.msra.mxu0 %v115
    %156 = vmatprep.subr.mxu0 0.0
    %157 = vmatpush1.msra.mxu0 0.0
    %158 = vmatprep.subr.mxu0 0.0
    %159 = vmatpush1.msra.mxu0 0.0
    %160 = vmatprep.subr.mxu0 0.0
    %161 = vmatpush1.msra.mxu0 0.0
    %162 = vmatprep.subr.mxu0 0.0
    %163 = vmatpush1.msra.mxu0 0.0
    %164 = vmatprep.subr.mxu0 0.0
    %165 = vmatpush1.msra.mxu0 0.0
    %166 = vmatprep.subr.mxu0 0.0
    %167 = vmatpush1.msra.mxu0 0.0
    %168 = vmatprep.subr.mxu0 0.0
    %169 = vmatpush1.msra.mxu0 0.0
    %170 = vmatprep.subr.mxu0 0.0
    %171 = vmatpush1.msra.mxu0 0.0
    %172 = vmatprep.subr.mxu0 0.0
    %173 = vmatpush1.msra.mxu0 0.0
    %174 = vmatprep.subr.mxu0 0.0
    %175 = vmatpush1.msra.mxu0 0.0
    %176 = vmatprep.subr.mxu0 0.0
    %177 = vmatpush1.msra.mxu0 0.0
    %178 = vmatprep.subr.mxu0 0.0
    %179 = vmatpush1.msra.mxu0 0.0
    %180 = vmatprep.subr.mxu0 0.0
    %181 = vmatpush1.msra.mxu0 0.0
    %182 = vmatprep.subr.mxu0 0.0
    %183 = vmatpush1.msra.mxu0 0.0
    %184 = vmatprep.subr.mxu0 0.0
    %185 = vmatpush1.msra.mxu0 0.0
    %186 = vmatprep.subr.mxu0 0.0
    %187 = vmatpush1.msra.mxu0 0.0
    %188 = vmatprep.subr.mxu0 0.0
    %189 = vmatpush1.msra.mxu0 0.0
    %190 = vmatprep.subr.mxu0 0.0
    %191 = vmatpush1.msra.mxu0 0.0
    %192 = vmatprep.subr.mxu0 0.0
    %193 = vmatpush1.msra.mxu0 0.0
    %194 = vmatprep.subr.mxu0 0.0
    %195 = vmatpush1.msra.mxu0 0.0
    %196 = vmatprep.subr.mxu0 0.0
    %197 = vmatpush1.msra.mxu0 0.0
    %198 = vmatprep.subr.mxu0 0.0
    %199 = vmatpush1.msra.mxu0 0.0
    %200 = vmatprep.mubr.f32.mxu0 0.0
    %201 = vmatmul.mubr.f32.gmra.mrb[0].mxu0 %v131
    %v202 = vpop.f32.mrb[0].mxu0
    %v203 = vadd.f32 %v122, %v202
    %v204 = vpop.f32.mrb[0].mxu0
    %v205 = vadd.f32 %v126, %v204
    %206 = vmatprep.mubr.f32.mxu0 0.0
    %207 = vmatmul.mubr.f32.gmra.mrb[0].mxu0 %v134
    %v208 = vpop.f32.mrb[0].mxu0
    %v209 = vadd.f32 %v122, %v208
    %v210 = vpop.f32.mrb[0].mxu0
    %v211 = vadd.f32 %v126, %v210
    %212 = vdwg.mxu0
    %v213 = vld [vmem:[#allocation8] sm:$0xff]
    %v214 = vld [vmem:[#allocation8 + $0x8] sm:$0xff]
    %v215 = vld [vmem:[#allocation8 + $0x10] sm:$0xff]
    %v216 = vld [vmem:[#allocation8 + $0x18] sm:$0xff]
    %v217 = vld [vmem:[#allocation9] sm:$0xff]
    %v218 = vld [vmem:[#allocation9 + $0x8] sm:$0xff]
    %v219 = vld [vmem:[#allocation9 + $0x10] sm:$0xff]
    %v220 = vld [vmem:[#allocation9 + $0x18] sm:$0xff]
    %vm221 = vcmask 261120
    %v223 = vsel %vm221, 0.0, 0
    %225 = vmatprep.subr.mxu0 0.0
    %226 = vmatpush1.msra.mxu0 %v213
    %227 = vmatprep.subr.mxu0 0.0
    %228 = vmatpush1.msra.mxu0 %v214
    %229 = vmatprep.subr.mxu0 0.0
    %230 = vmatpush1.msra.mxu0 %v215
    %231 = vmatprep.subr.mxu0 0.0
    %232 = vmatpush1.msra.mxu0 %v216
    %233 = vmatprep.subr.mxu0 0.0
    %234 = vmatpush1.msra.mxu0 0.0
    %235 = vmatprep.subr.mxu0 0.0
    %236 = vmatpush1.msra.mxu0 0.0
    %237 = vmatprep.subr.mxu0 0.0
    %238 = vmatpush1.msra.mxu0 0.0
    %239 = vmatprep.subr.mxu0 0.0
    %240 = vmatpush1.msra.mxu0 0.0
    %241 = vmatprep.subr.mxu0 0.0
    %242 = vmatpush1.msra.mxu0 0.0
    %243 = vmatprep.subr.mxu0 0.0
    %244 = vmatpush1.msra.mxu0 0.0
    %245 = vmatprep.subr.mxu0 0.0
    %246 = vmatpush1.msra.mxu0 0.0
    %247 = vmatprep.subr.mxu0 0.0
    %248 = vmatpush1.msra.mxu0 0.0
    %249 = vmatprep.subr.mxu0 0.0
    %250 = vmatpush1.msra.mxu0 0.0
    %251 = vmatprep.subr.mxu0 0.0
    %252 = vmatpush1.msra.mxu0 0.0
    %253 = vmatprep.subr.mxu0 0.0
    %254 = vmatpush1.msra.mxu0 0.0
    %255 = vmatprep.subr.mxu0 0.0
    %256 = vmatpush1.msra.mxu0 0.0
    %257 = vmatprep.subr.mxu0 0.0
    %258 = vmatpush1.msra.mxu0 0.0
    %259 = vmatprep.subr.mxu0 0.0
    %260 = vmatpush1.msra.mxu0 0.0
    %261 = vmatprep.subr.mxu0 0.0
    %262 = vmatpush1.msra.mxu0 0.0
    %263 = vmatprep.subr.mxu0 0.0
    %264 = vmatpush1.msra.mxu0 0.0
    %265 = vmatprep.subr.mxu0 0.0
    %266 = vmatpush1.msra.mxu0 0.0
    %267 = vmatprep.subr.mxu0 0.0
    %268 = vmatpush1.msra.mxu0 0.0
    %269 = vmatprep.subr.mxu0 0.0
    %270 = vmatpush1.msra.mxu0 0.0
    %271 = vmatprep.subr.mxu0 0.0
    %272 = vmatpush1.msra.mxu0 0.0
    %273 = vmatprep.subr.mxu0 0.0
    %274 = vmatpush1.msra.mxu0 0.0
    %275 = vmatprep.subr.mxu0 0.0
    %276 = vmatpush1.msra.mxu0 0.0
    %277 = vmatprep.subr.mxu0 0.0
    %278 = vmatpush1.msra.mxu0 0.0
    %279 = vmatprep.subr.mxu0 0.0
    %280 = vmatpush1.msra.mxu0 0.0
    %281 = vmatprep.subr.mxu0 0.0
    %282 = vmatpush1.msra.mxu0 0.0
    %283 = vmatprep.subr.mxu0 0.0
    %284 = vmatpush1.msra.mxu0 0.0
    %285 = vmatprep.subr.mxu0 0.0
    %286 = vmatpush1.msra.mxu0 0.0
    %287 = vmatprep.subr.mxu0 0.0
    %288 = vmatpush1.msra.mxu0 0.0
    %289 = vmatprep.mubr.f32.mxu0 0.0
    %290 = vmatmul.mubr.f32.gmra.mrb[0].mxu0 %v223
    %v291 = vpop.f32.mrb[0].mxu0
    %v292 = vadd.f32 0.0, %v291
    %v293 = vpop.f32.mrb[0].mxu0
    %294 = vdwg.mxu0
    %v295 = vadd.f32 %v203, %v292
    %v296 = vxor.u32 %v295, 2147483648
    %v297 = vmul.f32 %v296, 1.442695
    %v298 = vpow.pop %v297
    %v299 = vadd.f32 %v298, 1.0
    %v300 = vrcp.pop %v299
    %v301 = vmul.f32 1.0, %v300
    %v302 = vtanh.pop %v295
    %v303 = vmul.f32 %v301, 0.0
    %305 = vrot.lane.b32.xlu0 %v302, 64
    %v306 = vpop.permute.xlu0 %305
    %v308 = vmul.f32 %v301, %v306
    %310 = vrot.lane.b32.xlu0 %v308, 32
    %v311 = vpop.permute.xlu0 %310
    %v313 = vadd.f32 %v303, %v311
    %v314 = vtanh.pop %v313
    %316 = vrot.lane.b32.xlu0 %v314, 64
    %v317 = vpop.permute.xlu0 %316
    %v319 = vmul.f32 %v301, %v317
    %320 = vmatprep.subr.mxu0 0.0
    %321 = vmatpush1.msra.mxu0 %v217
    %322 = vmatprep.subr.mxu0 0.0
    %323 = vmatpush1.msra.mxu0 %v218
    %324 = vmatprep.subr.mxu0 0.0
    %325 = vmatpush1.msra.mxu0 %v219
    %326 = vmatprep.subr.mxu0 0.0
    %327 = vmatpush1.msra.mxu0 %v220
    %328 = vmatprep.subr.mxu0 0.0
    %329 = vmatpush1.msra.mxu0 0.0
    %330 = vmatprep.subr.mxu0 0.0
    %331 = vmatpush1.msra.mxu0 0.0
    %332 = vmatprep.subr.mxu0 0.0
    %333 = vmatpush1.msra.mxu0 0.0
    %334 = vmatprep.subr.mxu0 0.0
    %335 = vmatpush1.msra.mxu0 0.0
    %336 = vmatprep.subr.mxu0 0.0
    %337 = vmatpush1.msra.mxu0 0.0
    %338 = vmatprep.subr.mxu0 0.0
    %339 = vmatpush1.msra.mxu0 0.0
    %340 = vmatprep.subr.mxu0 0.0
    %341 = vmatpush1.msra.mxu0 0.0
    %342 = vmatprep.subr.mxu0 0.0
    %343 = vmatpush1.msra.mxu0 0.0
    %344 = vmatprep.subr.mxu0 0.0
    %345 = vmatpush1.msra.mxu0 0.0
    %346 = vmatprep.subr.mxu0 0.0
    %347 = vmatpush1.msra.mxu0 0.0
    %348 = vmatprep.subr.mxu0 0.0
    %349 = vmatpush1.msra.mxu0 0.0
    %350 = vmatprep.subr.mxu0 0.0
    %351 = vmatpush1.msra.mxu0 0.0
    %352 = vmatprep.subr.mxu0 0.0
    %353 = vmatpush1.msra.mxu0 0.0
    %354 = vmatprep.subr.mxu0 0.0
    %355 = vmatpush1.msra.mxu0 0.0
    %356 = vmatprep.subr.mxu0 0.0
    %357 = vmatpush1.msra.mxu0 0.0
    %358 = vmatprep.subr.mxu0 0.0
    %359 = vmatpush1.msra.mxu0 0.0
    %360 = vmatprep.subr.mxu0 0.0
    %361 = vmatpush1.msra.mxu0 0.0
    %362 = vmatprep.subr.mxu0 0.0
    %363 = vmatpush1.msra.mxu0 0.0
    %364 = vmatprep.subr.mxu0 0.0
    %365 = vmatpush1.msra.mxu0 0.0
    %366 = vmatprep.subr.mxu0 0.0
    %367 = vmatpush1.msra.mxu0 0.0
    %368 = vmatprep.subr.mxu0 0.0
    %369 = vmatpush1.msra.mxu0 0.0
    %370 = vmatprep.subr.mxu0 0.0
    %371 = vmatpush1.msra.mxu0 0.0
    %372 = vmatprep.subr.mxu0 0.0
    %373 = vmatpush1.msra.mxu0 0.0
    %374 = vmatprep.subr.mxu0 0.0
    %375 = vmatpush1.msra.mxu0 0.0
    %376 = vmatprep.subr.mxu0 0.0
    %377 = vmatpush1.msra.mxu0 0.0
    %378 = vmatprep.subr.mxu0 0.0
    %379 = vmatpush1.msra.mxu0 0.0
    %380 = vmatprep.subr.mxu0 0.0
    %381 = vmatpush1.msra.mxu0 0.0
    %382 = vmatprep.subr.mxu0 0.0
    %383 = vmatpush1.msra.mxu0 0.0
    %384 = vmatprep.mubr.f32.mxu0 0.0
    %385 = vmatmul.mubr.f32.gmra.mrb[0].mxu0 %v223
    %v386 = vpop.f32.mrb[0].mxu0
    %v387 = vadd.f32 0.0, %v386
    %v388 = vpop.f32.mrb[0].mxu0
    %389 = vdwg.mxu0
    %v391 = vrot.slane %v387, 2
    %v393 = vadd.f32 %v211, %v391
    %v394 = vxor.u32 %v393, 2147483648
    %v395 = vmul.f32 %v394, 1.442695
    %v396 = vpow.pop %v395
    %v397 = vadd.f32 %v396, 1.0
    %v398 = vrcp.pop %v397
    %v399 = vmul.f32 1.0, %v398
    %v400 = vtanh.pop %v393
    %v401 = vmul.f32 %v399, 0.0
    %403 = vrot.lane.b32.xlu0 %v400, 64
    %v404 = vpop.permute.xlu0 %403
    %v406 = vmul.f32 %v399, %v404
    %408 = vrot.lane.b32.xlu0 %v406, 32
    %v409 = vpop.permute.xlu0 %408
    %v411 = vadd.f32 %v401, %v409
    %v412 = vtanh.pop %v411
    %414 = vrot.lane.b32.xlu0 %v412, 64
    %v415 = vpop.permute.xlu0 %414
    %v417 = vmul.f32 %v399, %v415
    %419 = vrot.lane.b32.xlu0 %v319, 32
    %v420 = vpop.permute.xlu0 %419
    %vm422 = vcmask 254976
    %423 = vst.msk [vmem:[#allocation2] sm:$0x3] %vm422, %v420
    %425 = vrot.lane.b32.xlu0 %v417, 64
    %v426 = vpop.permute.xlu0 %425
    %vm428 = vcmask 523526
    %429 = vst.msk [vmem:[#allocation2 + $0x8] sm:$0xc0] %vm428, %v426
    %v430 = vsel %vm221, %v420, 0
    %432 = vmatprep.subr.mxu0 0.0
    %433 = vmatpush1.msra.mxu0 %v213
    %434 = vmatprep.subr.mxu0 0.0
    %435 = vmatpush1.msra.mxu0 %v214
    %436 = vmatprep.subr.mxu0 0.0
    %437 = vmatpush1.msra.mxu0 %v215
    %438 = vmatprep.subr.mxu0 0.0
    %439 = vmatpush1.msra.mxu0 %v216
    %440 = vmatprep.subr.mxu0 0.0
    %441 = vmatpush1.msra.mxu0 0.0
    %442 = vmatprep.subr.mxu0 0.0
    %443 = vmatpush1.msra.mxu0 0.0
    %444 = vmatprep.subr.mxu0 0.0
    %445 = vmatpush1.msra.mxu0 0.0
    %446 = vmatprep.subr.mxu0 0.0
    %447 = vmatpush1.msra.mxu0 0.0
    %448 = vmatprep.subr.mxu0 0.0
    %449 = vmatpush1.msra.mxu0 0.0
    %450 = vmatprep.subr.mxu0 0.0
    %451 = vmatpush1.msra.mxu0 0.0
    %452 = vmatprep.subr.mxu0 0.0
    %453 = vmatpush1.msra.mxu0 0.0
    %454 = vmatprep.subr.mxu0 0.0
    %455 = vmatpush1.msra.mxu0 0.0
    %456 = vmatprep.subr.mxu0 0.0
    %457 = vmatpush1.msra.mxu0 0.0
    %458 = vmatprep.subr.mxu0 0.0
    %459 = vmatpush1.msra.mxu0 0.0
    %460 = vmatprep.subr.mxu0 0.0
    %461 = vmatpush1.msra.mxu0 0.0
    %462 = vmatprep.subr.mxu0 0.0
    %463 = vmatpush1.msra.mxu0 0.0
    %464 = vmatprep.subr.mxu0 0.0
    %465 = vmatpush1.msra.mxu0 0.0
    %466 = vmatprep.subr.mxu0 0.0
    %467 = vmatpush1.msra.mxu0 0.0
    %468 = vmatprep.subr.mxu0 0.0
    %469 = vmatpush1.msra.mxu0 0.0
    %470 = vmatprep.subr.mxu0 0.0
    %471 = vmatpush1.msra.mxu0 0.0
    %472 = vmatprep.subr.mxu0 0.0
    %473 = vmatpush1.msra.mxu0 0.0
    %474 = vmatprep.subr.mxu0 0.0
    %475 = vmatpush1.msra.mxu0 0.0
    %476 = vmatprep.subr.mxu0 0.0
    %477 = vmatpush1.msra.mxu0 0.0
    %478 = vmatprep.subr.mxu0 0.0
    %479 = vmatpush1.msra.mxu0 0.0
    %480 = vmatprep.subr.mxu0 0.0
    %481 = vmatpush1.msra.mxu0 0.0
    %482 = vmatprep.subr.mxu0 0.0
    %483 = vmatpush1.msra.mxu0 0.0
    %484 = vmatprep.subr.mxu0 0.0
    %485 = vmatpush1.msra.mxu0 0.0
    %486 = vmatprep.subr.mxu0 0.0
    %487 = vmatpush1.msra.mxu0 0.0
    %488 = vmatprep.subr.mxu0 0.0
    %489 = vmatpush1.msra.mxu0 0.0
    %490 = vmatprep.subr.mxu0 0.0
    %491 = vmatpush1.msra.mxu0 0.0
    %492 = vmatprep.subr.mxu0 0.0
    %493 = vmatpush1.msra.mxu0 0.0
    %494 = vmatprep.subr.mxu0 0.0
    %495 = vmatpush1.msra.mxu0 0.0
    %496 = vmatprep.mubr.f32.mxu0 0.0
    %497 = vmatmul.mubr.f32.gmra.mrb[0].mxu0 %v430
    %v498 = vpop.f32.mrb[0].mxu0
    %v499 = vadd.f32 0.0, %v498
    %v500 = vpop.f32.mrb[0].mxu0
    %501 = vdwg.mxu0
    %v503 = vrot.slane %v499, 6
    %v505 = vadd.f32 %v203, %v503
    %v506 = vxor.u32 %v505, 2147483648
    %v507 = vmul.f32 %v506, 1.442695
    %v508 = vpow.pop %v507
    %v509 = vadd.f32 %v508, 1.0
    %v510 = vrcp.pop %v509
    %v511 = vmul.f32 1.0, %v510
    %v512 = vtanh.pop %v505
    %v514 = vrot.slane %v313, 6
    %v516 = vmul.f32 %v511, %v514
    %518 = vrot.lane.b32.xlu0 %v512, 64
    %v519 = vpop.permute.xlu0 %518
    %v521 = vmul.f32 %v511, %v519
    %523 = vrot.lane.b32.xlu0 %v521, 32
    %v524 = vpop.permute.xlu0 %523
    %v526 = vadd.f32 %v516, %v524
    %v527 = vtanh.pop %v526
    %529 = vrot.lane.b32.xlu0 %v527, 64
    %v530 = vpop.permute.xlu0 %529
    %v532 = vmul.f32 %v511, %v530
    %v533 = vrot.slane %v417, 6
    %534 = vrot.lane.b32.xlu0 %v533, 32
    %v535 = vpop.permute.xlu0 %534
    %v536 = vsel %vm221, %v535, 0
    %538 = vmatprep.subr.mxu0 0.0
    %539 = vmatpush1.msra.mxu0 %v217
    %540 = vmatprep.subr.mxu0 0.0
    %541 = vmatpush1.msra.mxu0 %v218
    %542 = vmatprep.subr.mxu0 0.0
    %543 = vmatpush1.msra.mxu0 %v219
    %544 = vmatprep.subr.mxu0 0.0
    %545 = vmatpush1.msra.mxu0 %v220
    %546 = vmatprep.subr.mxu0 0.0
    %547 = vmatpush1.msra.mxu0 0.0
    %548 = vmatprep.subr.mxu0 0.0
    %549 = vmatpush1.msra.mxu0 0.0
    %550 = vmatprep.subr.mxu0 0.0
    %551 = vmatpush1.msra.mxu0 0.0
    %552 = vmatprep.subr.mxu0 0.0
    %553 = vmatpush1.msra.mxu0 0.0
    %554 = vmatprep.subr.mxu0 0.0
    %555 = vmatpush1.msra.mxu0 0.0
    %556 = vmatprep.subr.mxu0 0.0
    %557 = vmatpush1.msra.mxu0 0.0
    %558 = vmatprep.subr.mxu0 0.0
    %559 = vmatpush1.msra.mxu0 0.0
    %560 = vmatprep.subr.mxu0 0.0
    %561 = vmatpush1.msra.mxu0 0.0
    %562 = vmatprep.subr.mxu0 0.0
    %563 = vmatpush1.msra.mxu0 0.0
    %564 = vmatprep.subr.mxu0 0.0
    %565 = vmatpush1.msra.mxu0 0.0
    %566 = vmatprep.subr.mxu0 0.0
    %567 = vmatpush1.msra.mxu0 0.0
    %568 = vmatprep.subr.mxu0 0.0
    %569 = vmatpush1.msra.mxu0 0.0
    %570 = vmatprep.subr.mxu0 0.0
    %571 = vmatpush1.msra.mxu0 0.0
    %572 = vmatprep.subr.mxu0 0.0
    %573 = vmatpush1.msra.mxu0 0.0
    %574 = vmatprep.subr.mxu0 0.0
    %575 = vmatpush1.msra.mxu0 0.0
    %576 = vmatprep.subr.mxu0 0.0
    %577 = vmatpush1.msra.mxu0 0.0
    %578 = vmatprep.subr.mxu0 0.0
    %579 = vmatpush1.msra.mxu0 0.0
    %580 = vmatprep.subr.mxu0 0.0
    %581 = vmatpush1.msra.mxu0 0.0
    %582 = vmatprep.subr.mxu0 0.0
    %583 = vmatpush1.msra.mxu0 0.0
    %584 = vmatprep.subr.mxu0 0.0
    %585 = vmatpush1.msra.mxu0 0.0
    %586 = vmatprep.subr.mxu0 0.0
    %587 = vmatpush1.msra.mxu0 0.0
    %588 = vmatprep.subr.mxu0 0.0
    %589 = vmatpush1.msra.mxu0 0.0
    %590 = vmatprep.subr.mxu0 0.0
    %591 = vmatpush1.msra.mxu0 0.0
    %592 = vmatprep.subr.mxu0 0.0
    %593 = vmatpush1.msra.mxu0 0.0
    %594 = vmatprep.subr.mxu0 0.0
    %595 = vmatpush1.msra.mxu0 0.0
    %596 = vmatprep.subr.mxu0 0.0
    %597 = vmatpush1.msra.mxu0 0.0
    %598 = vmatprep.subr.mxu0 0.0
    %599 = vmatpush1.msra.mxu0 0.0
    %600 = vmatprep.subr.mxu0 0.0
    %601 = vmatpush1.msra.mxu0 0.0
    %602 = vmatprep.mubr.f32.mxu0 0.0
    %603 = vmatmul.mubr.f32.gmra.mrb[0].mxu0 %v536
    %v604 = vpop.f32.mrb[0].mxu0
    %v605 = vadd.f32 0.0, %v604
    %v606 = vpop.f32.mrb[0].mxu0
    %607 = vdwg.mxu0
    %v609 = vrot.slane %v605, 4
    %v611 = vadd.f32 %v211, %v609
    %v612 = vxor.u32 %v611, 2147483648
    %v613 = vmul.f32 %v612, 1.442695
    %v614 = vpow.pop %v613
    %v615 = vadd.f32 %v614, 1.0
    %v616 = vrcp.pop %v615
    %v617 = vmul.f32 1.0, %v616
    %v618 = vtanh.pop %v611
    %v620 = vrot.slane %v411, 2
    %v622 = vmul.f32 %v617, %v620
    %624 = vrot.lane.b32.xlu0 %v618, 64
    %v625 = vpop.permute.xlu0 %624
    %v627 = vmul.f32 %v617, %v625
    %629 = vrot.lane.b32.xlu0 %v627, 32
    %v630 = vpop.permute.xlu0 %629
    %v632 = vadd.f32 %v622, %v630
    %v633 = vtanh.pop %v632
    %635 = vrot.lane.b32.xlu0 %v633, 64
    %v636 = vpop.permute.xlu0 %635
    %v638 = vmul.f32 %v617, %v636
    %640 = vrot.lane.b32.xlu0 %v532, 32
    %v641 = vpop.permute.xlu0 %640
    %vm643 = vcmask 257026
    %644 = vst.msk [vmem:[#allocation2] sm:$0xc] %vm643, %v641
    %646 = vrot.lane.b32.xlu0 %v638, 64
    %v647 = vpop.permute.xlu0 %646
    %vm649 = vcmask 521476
    %650 = vst.msk [vmem:[#allocation2 + $0x8] sm:$0x30] %vm649, %v647
    %v651 = vrot.slane %v532, 2
    %652 = vrot.lane.b32.xlu0 %v651, 32
    %v653 = vpop.permute.xlu0 %652
    %v654 = vsel %vm221, %v653, 0
    %656 = vmatprep.subr.mxu0 0.0
    %657 = vmatpush1.msra.mxu0 %v213
    %658 = vmatprep.subr.mxu0 0.0
    %659 = vmatpush1.msra.mxu0 %v214
    %660 = vmatprep.subr.mxu0 0.0
    %661 = vmatpush1.msra.mxu0 %v215
    %662 = vmatprep.subr.mxu0 0.0
    %663 = vmatpush1.msra.mxu0 %v216
    %664 = vmatprep.subr.mxu0 0.0
    %665 = vmatpush1.msra.mxu0 0.0
    %666 = vmatprep.subr.mxu0 0.0
    %667 = vmatpush1.msra.mxu0 0.0
    %668 = vmatprep.subr.mxu0 0.0
    %669 = vmatpush1.msra.mxu0 0.0
    %670 = vmatprep.subr.mxu0 0.0
    %671 = vmatpush1.msra.mxu0 0.0
    %672 = vmatprep.subr.mxu0 0.0
    %673 = vmatpush1.msra.mxu0 0.0
    %674 = vmatprep.subr.mxu0 0.0
    %675 = vmatpush1.msra.mxu0 0.0
    %676 = vmatprep.subr.mxu0 0.0
    %677 = vmatpush1.msra.mxu0 0.0
    %678 = vmatprep.subr.mxu0 0.0
    %679 = vmatpush1.msra.mxu0 0.0
    %680 = vmatprep.subr.mxu0 0.0
    %681 = vmatpush1.msra.mxu0 0.0
    %682 = vmatprep.subr.mxu0 0.0
    %683 = vmatpush1.msra.mxu0 0.0
    %684 = vmatprep.subr.mxu0 0.0
    %685 = vmatpush1.msra.mxu0 0.0
    %686 = vmatprep.subr.mxu0 0.0
    %687 = vmatpush1.msra.mxu0 0.0
    %688 = vmatprep.subr.mxu0 0.0
    %689 = vmatpush1.msra.mxu0 0.0
    %690 = vmatprep.subr.mxu0 0.0
    %691 = vmatpush1.msra.mxu0 0.0
    %692 = vmatprep.subr.mxu0 0.0
    %693 = vmatpush1.msra.mxu0 0.0
    %694 = vmatprep.subr.mxu0 0.0
    %695 = vmatpush1.msra.mxu0 0.0
    %696 = vmatprep.subr.mxu0 0.0
    %697 = vmatpush1.msra.mxu0 0.0
    %698 = vmatprep.subr.mxu0 0.0
    %699 = vmatpush1.msra.mxu0 0.0
    %700 = vmatprep.subr.mxu0 0.0
    %701 = vmatpush1.msra.mxu0 0.0
    %702 = vmatprep.subr.mxu0 0.0
    %703 = vmatpush1.msra.mxu0 0.0
    %704 = vmatprep.subr.mxu0 0.0
    %705 = vmatpush1.msra.mxu0 0.0
    %706 = vmatprep.subr.mxu0 0.0
    %707 = vmatpush1.msra.mxu0 0.0
    %708 = vmatprep.subr.mxu0 0.0
    %709 = vmatpush1.msra.mxu0 0.0
    %710 = vmatprep.subr.mxu0 0.0
    %711 = vmatpush1.msra.mxu0 0.0
    %712 = vmatprep.subr.mxu0 0.0
    %713 = vmatpush1.msra.mxu0 0.0
    %714 = vmatprep.subr.mxu0 0.0
    %715 = vmatpush1.msra.mxu0 0.0
    %716 = vmatprep.subr.mxu0 0.0
    %717 = vmatpush1.msra.mxu0 0.0
    %718 = vmatprep.subr.mxu0 0.0
    %719 = vmatpush1.msra.mxu0 0.0
    %720 = vmatprep.mubr.f32.mxu0 0.0
    %721 = vmatmul.mubr.f32.gmra.mrb[0].mxu0 %v654
    %v722 = vpop.f32.mrb[0].mxu0
    %v723 = vadd.f32 0.0, %v722
    %v724 = vpop.f32.mrb[0].mxu0
    %725 = vdwg.mxu0
    %v727 = vrot.slane %v723, 4
    %v729 = vadd.f32 %v203, %v727
    %v730 = vxor.u32 %v729, 2147483648
    %v731 = vmul.f32 %v730, 1.442695
    %v732 = vpow.pop %v731
    %v733 = vadd.f32 %v732, 1.0
    %v734 = vrcp.pop %v733
    %v735 = vmul.f32 1.0, %v734
    %v736 = vtanh.pop %v729
    %v738 = vrot.slane %v526, 6
    %v740 = vmul.f32 %v735, %v738
    %742 = vrot.lane.b32.xlu0 %v736, 64
    %v743 = vpop.permute.xlu0 %742
    %v745 = vmul.f32 %v735, %v743
    %747 = vrot.lane.b32.xlu0 %v745, 32
    %v748 = vpop.permute.xlu0 %747
    %v750 = vadd.f32 %v740, %v748
    %v751 = vtanh.pop %v750
    %753 = vrot.lane.b32.xlu0 %v751, 64
    %v754 = vpop.permute.xlu0 %753
    %v756 = vmul.f32 %v735, %v754
    %v757 = vrot.slane %v638, 4
    %758 = vrot.lane.b32.xlu0 %v757, 32
    %v759 = vpop.permute.xlu0 %758
    %v760 = vsel %vm221, %v759, 0
    %762 = vmatprep.subr.mxu0 0.0
    %763 = vmatpush1.msra.mxu0 %v217
    %764 = vmatprep.subr.mxu0 0.0
    %765 = vmatpush1.msra.mxu0 %v218
    %766 = vmatprep.subr.mxu0 0.0
    %767 = vmatpush1.msra.mxu0 %v219
    %768 = vmatprep.subr.mxu0 0.0
    %769 = vmatpush1.msra.mxu0 %v220
    %770 = vmatprep.subr.mxu0 0.0
    %771 = vmatpush1.msra.mxu0 0.0
    %772 = vmatprep.subr.mxu0 0.0
    %773 = vmatpush1.msra.mxu0 0.0
    %774 = vmatprep.subr.mxu0 0.0
    %775 = vmatpush1.msra.mxu0 0.0
    %776 = vmatprep.subr.mxu0 0.0
    %777 = vmatpush1.msra.mxu0 0.0
    %778 = vmatprep.subr.mxu0 0.0
    %779 = vmatpush1.msra.mxu0 0.0
    %780 = vmatprep.subr.mxu0 0.0
    %781 = vmatpush1.msra.mxu0 0.0
    %782 = vmatprep.subr.mxu0 0.0
    %783 = vmatpush1.msra.mxu0 0.0
    %784 = vmatprep.subr.mxu0 0.0
    %785 = vmatpush1.msra.mxu0 0.0
    %786 = vmatprep.subr.mxu0 0.0
    %787 = vmatpush1.msra.mxu0 0.0
    %788 = vmatprep.subr.mxu0 0.0
    %789 = vmatpush1.msra.mxu0 0.0
    %790 = vmatprep.subr.mxu0 0.0
    %791 = vmatpush1.msra.mxu0 0.0
    %792 = vmatprep.subr.mxu0 0.0
    %793 = vmatpush1.msra.mxu0 0.0
    %794 = vmatprep.subr.mxu0 0.0
    %795 = vmatpush1.msra.mxu0 0.0
    %796 = vmatprep.subr.mxu0 0.0
    %797 = vmatpush1.msra.mxu0 0.0
    %798 = vmatprep.subr.mxu0 0.0
    %799 = vmatpush1.msra.mxu0 0.0
    %800 = vmatprep.subr.mxu0 0.0
    %801 = vmatpush1.msra.mxu0 0.0
    %802 = vmatprep.subr.mxu0 0.0
    %803 = vmatpush1.msra.mxu0 0.0
    %804 = vmatprep.subr.mxu0 0.0
    %805 = vmatpush1.msra.mxu0 0.0
    %806 = vmatprep.subr.mxu0 0.0
    %807 = vmatpush1.msra.mxu0 0.0
    %808 = vmatprep.subr.mxu0 0.0
    %809 = vmatpush1.msra.mxu0 0.0
    %810 = vmatprep.subr.mxu0 0.0
    %811 = vmatpush1.msra.mxu0 0.0
    %812 = vmatprep.subr.mxu0 0.0
    %813 = vmatpush1.msra.mxu0 0.0
    %814 = vmatprep.subr.mxu0 0.0
    %815 = vmatpush1.msra.mxu0 0.0
    %816 = vmatprep.subr.mxu0 0.0
    %817 = vmatpush1.msra.mxu0 0.0
    %818 = vmatprep.subr.mxu0 0.0
    %819 = vmatpush1.msra.mxu0 0.0
    %820 = vmatprep.subr.mxu0 0.0
    %821 = vmatpush1.msra.mxu0 0.0
    %822 = vmatprep.subr.mxu0 0.0
    %823 = vmatpush1.msra.mxu0 0.0
    %824 = vmatprep.subr.mxu0 0.0
    %825 = vmatpush1.msra.mxu0 0.0
    %826 = vmatprep.mubr.f32.mxu0 0.0
    %827 = vmatmul.mubr.f32.gmra.mrb[0].mxu0 %v760
    %v828 = vpop.f32.mrb[0].mxu0
    %v829 = vadd.f32 0.0, %v828
    %v830 = vpop.f32.mrb[0].mxu0
    %831 = vdwg.mxu0
    %v833 = vrot.slane %v829, 6
    %v835 = vadd.f32 %v211, %v833
    %v836 = vxor.u32 %v835, 2147483648
    %v837 = vmul.f32 %v836, 1.442695
    %v838 = vpow.pop %v837
    %v839 = vadd.f32 %v838, 1.0
    %v840 = vrcp.pop %v839
    %v841 = vmul.f32 1.0, %v840
    %v842 = vtanh.pop %v835
    %v844 = vrot.slane %v632, 2
    %v846 = vmul.f32 %v841, %v844
    %848 = vrot.lane.b32.xlu0 %v842, 64
    %v849 = vpop.permute.xlu0 %848
    %v851 = vmul.f32 %v841, %v849
    %853 = vrot.lane.b32.xlu0 %v851, 32
    %v854 = vpop.permute.xlu0 %853
    %v856 = vadd.f32 %v846, %v854
    %v857 = vtanh.pop %v856
    %859 = vrot.lane.b32.xlu0 %v857, 64
    %v860 = vpop.permute.xlu0 %859
    %v862 = vmul.f32 %v841, %v860
    %864 = vrot.lane.b32.xlu0 %v756, 32
    %v865 = vpop.permute.xlu0 %864
    %vm867 = vcmask 259076
    %868 = vst.msk [vmem:[#allocation2] sm:$0x30] %vm867, %v865
    %870 = vrot.lane.b32.xlu0 %v862, 64
    %v871 = vpop.permute.xlu0 %870
    %vm873 = vcmask 519426
    %874 = vst.msk [vmem:[#allocation2 + $0x8] sm:$0xc] %vm873, %v871
    %v875 = vrot.slane %v756, 4
    %876 = vrot.lane.b32.xlu0 %v875, 32
    %v877 = vpop.permute.xlu0 %876
    %v878 = vsel %vm221, %v877, 0
    %880 = vmatprep.subr.mxu0 0.0
    %881 = vmatpush1.msra.mxu0 %v213
    %882 = vmatprep.subr.mxu0 0.0
    %883 = vmatpush1.msra.mxu0 %v214
    %884 = vmatprep.subr.mxu0 0.0
    %885 = vmatpush1.msra.mxu0 %v215
    %886 = vmatprep.subr.mxu0 0.0
    %887 = vmatpush1.msra.mxu0 %v216
    %888 = vmatprep.subr.mxu0 0.0
    %889 = vmatpush1.msra.mxu0 0.0
    %890 = vmatprep.subr.mxu0 0.0
    %891 = vmatpush1.msra.mxu0 0.0
    %892 = vmatprep.subr.mxu0 0.0
    %893 = vmatpush1.msra.mxu0 0.0
    %894 = vmatprep.subr.mxu0 0.0
    %895 = vmatpush1.msra.mxu0 0.0
    %896 = vmatprep.subr.mxu0 0.0
    %897 = vmatpush1.msra.mxu0 0.0
    %898 = vmatprep.subr.mxu0 0.0
    %899 = vmatpush1.msra.mxu0 0.0
    %900 = vmatprep.subr.mxu0 0.0
    %901 = vmatpush1.msra.mxu0 0.0
    %902 = vmatprep.subr.mxu0 0.0
    %903 = vmatpush1.msra.mxu0 0.0
    %904 = vmatprep.subr.mxu0 0.0
    %905 = vmatpush1.msra.mxu0 0.0
    %906 = vmatprep.subr.mxu0 0.0
    %907 = vmatpush1.msra.mxu0 0.0
    %908 = vmatprep.subr.mxu0 0.0
    %909 = vmatpush1.msra.mxu0 0.0
    %910 = vmatprep.subr.mxu0 0.0
    %911 = vmatpush1.msra.mxu0 0.0
    %912 = vmatprep.subr.mxu0 0.0
    %913 = vmatpush1.msra.mxu0 0.0
    %914 = vmatprep.subr.mxu0 0.0
    %915 = vmatpush1.msra.mxu0 0.0
    %916 = vmatprep.subr.mxu0 0.0
    %917 = vmatpush1.msra.mxu0 0.0
    %918 = vmatprep.subr.mxu0 0.0
    %919 = vmatpush1.msra.mxu0 0.0
    %920 = vmatprep.subr.mxu0 0.0
    %921 = vmatpush1.msra.mxu0 0.0
    %922 = vmatprep.subr.mxu0 0.0
    %923 = vmatpush1.msra.mxu0 0.0
    %924 = vmatprep.subr.mxu0 0.0
    %925 = vmatpush1.msra.mxu0 0.0
    %926 = vmatprep.subr.mxu0 0.0
    %927 = vmatpush1.msra.mxu0 0.0
    %928 = vmatprep.subr.mxu0 0.0
    %929 = vmatpush1.msra.mxu0 0.0
    %930 = vmatprep.subr.mxu0 0.0
    %931 = vmatpush1.msra.mxu0 0.0
    %932 = vmatprep.subr.mxu0 0.0
    %933 = vmatpush1.msra.mxu0 0.0
    %934 = vmatprep.subr.mxu0 0.0
    %935 = vmatpush1.msra.mxu0 0.0
    %936 = vmatprep.subr.mxu0 0.0
    %937 = vmatpush1.msra.mxu0 0.0
    %938 = vmatprep.subr.mxu0 0.0
    %939 = vmatpush1.msra.mxu0 0.0
    %940 = vmatprep.subr.mxu0 0.0
    %941 = vmatpush1.msra.mxu0 0.0
    %942 = vmatprep.subr.mxu0 0.0
    %943 = vmatpush1.msra.mxu0 0.0
    %944 = vmatprep.mubr.f32.mxu0 0.0
    %945 = vmatmul.mubr.f32.gmra.mrb[0].mxu0 %v878
    %v946 = vpop.f32.mrb[0].mxu0
    %v947 = vadd.f32 0.0, %v946
    %v948 = vpop.f32.mrb[0].mxu0
    %949 = vdwg.mxu0
    %v951 = vrot.slane %v947, 2
    %v953 = vadd.f32 %v203, %v951
    %v954 = vxor.u32 %v953, 2147483648
    %v955 = vmul.f32 %v954, 1.442695
    %v956 = vpow.pop %v955
    %v957 = vadd.f32 %v956, 1.0
    %v958 = vrcp.pop %v957
    %v959 = vmul.f32 1.0, %v958
    %v960 = vtanh.pop %v953
    %v962 = vrot.slane %v750, 6
    %v964 = vmul.f32 %v959, %v962
    %966 = vrot.lane.b32.xlu0 %v960, 64
    %v967 = vpop.permute.xlu0 %966
    %v969 = vmul.f32 %v959, %v967
    %971 = vrot.lane.b32.xlu0 %v969, 32
    %v972 = vpop.permute.xlu0 %971
    %v974 = vadd.f32 %v964, %v972
    %v975 = vtanh.pop %v974
    %977 = vrot.lane.b32.xlu0 %v975, 64
    %v978 = vpop.permute.xlu0 %977
    %v980 = vmul.f32 %v959, %v978
    %v981 = vrot.slane %v862, 2
    %982 = vrot.lane.b32.xlu0 %v981, 32
    %v983 = vpop.permute.xlu0 %982
    %v984 = vsel %vm221, %v983, 0
    %986 = vmatprep.subr.mxu0 0.0
    %987 = vmatpush1.msra.mxu0 %v217
    %988 = vmatprep.subr.mxu0 0.0
    %989 = vmatpush1.msra.mxu0 %v218
    %990 = vmatprep.subr.mxu0 0.0
    %991 = vmatpush1.msra.mxu0 %v219
    %992 = vmatprep.subr.mxu0 0.0
    %993 = vmatpush1.msra.mxu0 %v220
    %994 = vmatprep.subr.mxu0 0.0
    %995 = vmatpush1.msra.mxu0 0.0
    %996 = vmatprep.subr.mxu0 0.0
    %997 = vmatpush1.msra.mxu0 0.0
    %998 = vmatprep.subr.mxu0 0.0
    %999 = vmatpush1.msra.mxu0 0.0
    %1000 = vmatprep.subr.mxu0 0.0
    %1001 = vmatpush1.msra.mxu0 0.0
    %1002 = vmatprep.subr.mxu0 0.0
    %1003 = vmatpush1.msra.mxu0 0.0
    %1004 = vmatprep.subr.mxu0 0.0
    %1005 = vmatpush1.msra.mxu0 0.0
    %1006 = vmatprep.subr.mxu0 0.0
    %1007 = vmatpush1.msra.mxu0 0.0
    %1008 = vmatprep.subr.mxu0 0.0
    %1009 = vmatpush1.msra.mxu0 0.0
    %1010 = vmatprep.subr.mxu0 0.0
    %1011 = vmatpush1.msra.mxu0 0.0
    %1012 = vmatprep.subr.mxu0 0.0
    %1013 = vmatpush1.msra.mxu0 0.0
    %1014 = vmatprep.subr.mxu0 0.0
    %1015 = vmatpush1.msra.mxu0 0.0
    %1016 = vmatprep.subr.mxu0 0.0
    %1017 = vmatpush1.msra.mxu0 0.0
    %1018 = vmatprep.subr.mxu0 0.0
    %1019 = vmatpush1.msra.mxu0 0.0
    %1020 = vmatprep.subr.mxu0 0.0
    %1021 = vmatpush1.msra.mxu0 0.0
    %1022 = vmatprep.subr.mxu0 0.0
    %1023 = vmatpush1.msra.mxu0 0.0
    %1024 = vmatprep.subr.mxu0 0.0
    %1025 = vmatpush1.msra.mxu0 0.0
    %1026 = vmatprep.subr.mxu0 0.0
    %1027 = vmatpush1.msra.mxu0 0.0
    %1028 = vmatprep.subr.mxu0 0.0
    %1029 = vmatpush1.msra.mxu0 0.0
    %1030 = vmatprep.subr.mxu0 0.0
    %1031 = vmatpush1.msra.mxu0 0.0
    %1032 = vmatprep.subr.mxu0 0.0
    %1033 = vmatpush1.msra.mxu0 0.0
    %1034 = vmatprep.subr.mxu0 0.0
    %1035 = vmatpush1.msra.mxu0 0.0
    %1036 = vmatprep.subr.mxu0 0.0
    %1037 = vmatpush1.msra.mxu0 0.0
    %1038 = vmatprep.subr.mxu0 0.0
    %1039 = vmatpush1.msra.mxu0 0.0
    %1040 = vmatprep.subr.mxu0 0.0
    %1041 = vmatpush1.msra.mxu0 0.0
    %1042 = vmatprep.subr.mxu0 0.0
    %1043 = vmatpush1.msra.mxu0 0.0
    %1044 = vmatprep.subr.mxu0 0.0
    %1045 = vmatpush1.msra.mxu0 0.0
    %1046 = vmatprep.subr.mxu0 0.0
    %1047 = vmatpush1.msra.mxu0 0.0
    %1048 = vmatprep.subr.mxu0 0.0
    %1049 = vmatpush1.msra.mxu0 0.0
    %1050 = vmatprep.mubr.f32.mxu0 0.0
    %1051 = vmatmul.mubr.f32.gmra.mrb[0].mxu0 %v984
    %v1052 = vpop.f32.mrb[0].mxu0
    %v1053 = vadd.f32 0.0, %v1052
    %v1054 = vpop.f32.mrb[0].mxu0
    %1055 = vdwg.mxu0
    %v1056 = vadd.f32 %v211, %v1053
    %v1057 = vxor.u32 %v1056, 2147483648
    %v1058 = vmul.f32 %v1057, 1.442695
    %v1059 = vpow.pop %v1058
    %v1060 = vadd.f32 %v1059, 1.0
    %v1061 = vrcp.pop %v1060
    %v1062 = vmul.f32 1.0, %v1061
    %v1063 = vtanh.pop %v1056
    %v1065 = vrot.slane %v856, 2
    %v1067 = vmul.f32 %v1062, %v1065
    %1069 = vrot.lane.b32.xlu0 %v1063, 64
    %v1070 = vpop.permute.xlu0 %1069
    %v1072 = vmul.f32 %v1062, %v1070
    %1074 = vrot.lane.b32.xlu0 %v1072, 32
    %v1075 = vpop.permute.xlu0 %1074
    %v1077 = vadd.f32 %v1067, %v1075
    %v1078 = vtanh.pop %v1077
    %1080 = vrot.lane.b32.xlu0 %v1078, 64
    %v1081 = vpop.permute.xlu0 %1080
    %v1083 = vmul.f32 %v1062, %v1081
    %1085 = vrot.lane.b32.xlu0 %v980, 32
    %v1086 = vpop.permute.xlu0 %1085
    %vm1088 = vcmask 261126
    %1089 = vst.msk [vmem:[#allocation2] sm:$0xc0] %vm1088, %v1086
    %1091 = vrot.lane.b32.xlu0 %v1083, 64
    %v1092 = vpop.permute.xlu0 %1091
    %vm1094 = vcmask 517376
    %1095 = vst.msk [vmem:[#allocation2 + $0x8] sm:$0x3] %vm1094, %v1092
    %v1096 = vrot.slane %v980, 6
    %1097 = vrot.lane.b32.xlu0 %v1096, 32
    %v1098 = vpop.permute.xlu0 %1097
    %v1099 = vsel %vm221, %v1098, 0
    %1101 = vmatprep.subr.mxu0 0.0
    %1102 = vmatpush1.msra.mxu0 %v213
    %1103 = vmatprep.subr.mxu0 0.0
    %1104 = vmatpush1.msra.mxu0 %v214
    %1105 = vmatprep.subr.mxu0 0.0
    %1106 = vmatpush1.msra.mxu0 %v215
    %1107 = vmatprep.subr.mxu0 0.0
    %1108 = vmatpush1.msra.mxu0 %v216
    %1109 = vmatprep.subr.mxu0 0.0
    %1110 = vmatpush1.msra.mxu0 0.0
    %1111 = vmatprep.subr.mxu0 0.0
    %1112 = vmatpush1.msra.mxu0 0.0
    %1113 = vmatprep.subr.mxu0 0.0
    %1114 = vmatpush1.msra.mxu0 0.0
    %1115 = vmatprep.subr.mxu0 0.0
    %1116 = vmatpush1.msra.mxu0 0.0
    %1117 = vmatprep.subr.mxu0 0.0
    %1118 = vmatpush1.msra.mxu0 0.0
    %1119 = vmatprep.subr.mxu0 0.0
    %1120 = vmatpush1.msra.mxu0 0.0
    %1121 = vmatprep.subr.mxu0 0.0
    %1122 = vmatpush1.msra.mxu0 0.0
    %1123 = vmatprep.subr.mxu0 0.0
    %1124 = vmatpush1.msra.mxu0 0.0
    %1125 = vmatprep.subr.mxu0 0.0
    %1126 = vmatpush1.msra.mxu0 0.0
    %1127 = vmatprep.subr.mxu0 0.0
    %1128 = vmatpush1.msra.mxu0 0.0
    %1129 = vmatprep.subr.mxu0 0.0
    %1130 = vmatpush1.msra.mxu0 0.0
    %1131 = vmatprep.subr.mxu0 0.0
    %1132 = vmatpush1.msra.mxu0 0.0
    %1133 = vmatprep.subr.mxu0 0.0
    %1134 = vmatpush1.msra.mxu0 0.0
    %1135 = vmatprep.subr.mxu0 0.0
    %1136 = vmatpush1.msra.mxu0 0.0
    %1137 = vmatprep.subr.mxu0 0.0
    %1138 = vmatpush1.msra.mxu0 0.0
    %1139 = vmatprep.subr.mxu0 0.0
    %1140 = vmatpush1.msra.mxu0 0.0
    %1141 = vmatprep.subr.mxu0 0.0
    %1142 = vmatpush1.msra.mxu0 0.0
    %1143 = vmatprep.subr.mxu0 0.0
    %1144 = vmatpush1.msra.mxu0 0.0
    %1145 = vmatprep.subr.mxu0 0.0
    %1146 = vmatpush1.msra.mxu0 0.0
    %1147 = vmatprep.subr.mxu0 0.0
    %1148 = vmatpush1.msra.mxu0 0.0
    %1149 = vmatprep.subr.mxu0 0.0
    %1150 = vmatpush1.msra.mxu0 0.0
    %1151 = vmatprep.subr.mxu0 0.0
    %1152 = vmatpush1.msra.mxu0 0.0
    %1153 = vmatprep.subr.mxu0 0.0
    %1154 = vmatpush1.msra.mxu0 0.0
    %1155 = vmatprep.subr.mxu0 0.0
    %1156 = vmatpush1.msra.mxu0 0.0
    %1157 = vmatprep.subr.mxu0 0.0
    %1158 = vmatpush1.msra.mxu0 0.0
    %1159 = vmatprep.subr.mxu0 0.0
    %1160 = vmatpush1.msra.mxu0 0.0
    %1161 = vmatprep.subr.mxu0 0.0
    %1162 = vmatpush1.msra.mxu0 0.0
    %1163 = vmatprep.subr.mxu0 0.0
    %1164 = vmatpush1.msra.mxu0 0.0
    %1165 = vmatprep.mubr.f32.mxu0 0.0
    %1166 = vmatmul.mubr.f32.gmra.mrb[0].mxu0 %v1099
    %v1167 = vpop.f32.mrb[0].mxu0
    %v1168 = vadd.f32 0.0, %v1167
    %v1169 = vpop.f32.mrb[0].mxu0
    %1170 = vdwg.mxu0
    %v1171 = vadd.f32 %v209, %v1168
    %v1172 = vxor.u32 %v1171, 2147483648
    %v1173 = vmul.f32 %v1172, 1.442695
    %v1174 = vpow.pop %v1173
    %v1175 = vadd.f32 %v1174, 1.0
    %v1176 = vrcp.pop %v1175
    %v1177 = vmul.f32 1.0, %v1176
    %v1178 = vtanh.pop %v1171
    %v1180 = vrot.slane %v974, 6
    %v1182 = vmul.f32 %v1177, %v1180
    %1184 = vrot.lane.b32.xlu0 %v1178, 64
    %v1185 = vpop.permute.xlu0 %1184
    %v1187 = vmul.f32 %v1177, %v1185
    %1189 = vrot.lane.b32.xlu0 %v1187, 32
    %v1190 = vpop.permute.xlu0 %1189
    %v1192 = vadd.f32 %v1182, %v1190
    %v1193 = vtanh.pop %v1192
    %1195 = vrot.lane.b32.xlu0 %v1193, 64
    %v1196 = vpop.permute.xlu0 %1195
    %v1198 = vmul.f32 %v1177, %v1196
    %1199 = vrot.lane.b32.xlu0 %v1083, 32
    %v1200 = vpop.permute.xlu0 %1199
    %v1201 = vsel %vm221, %v1200, 0
    %1203 = vmatprep.subr.mxu0 0.0
    %1204 = vmatpush1.msra.mxu0 %v217
    %1205 = vmatprep.subr.mxu0 0.0
    %1206 = vmatpush1.msra.mxu0 %v218
    %1207 = vmatprep.subr.mxu0 0.0
    %1208 = vmatpush1.msra.mxu0 %v219
    %1209 = vmatprep.subr.mxu0 0.0
    %1210 = vmatpush1.msra.mxu0 %v220
    %1211 = vmatprep.subr.mxu0 0.0
    %1212 = vmatpush1.msra.mxu0 0.0
    %1213 = vmatprep.subr.mxu0 0.0
    %1214 = vmatpush1.msra.mxu0 0.0
    %1215 = vmatprep.subr.mxu0 0.0
    %1216 = vmatpush1.msra.mxu0 0.0
    %1217 = vmatprep.subr.mxu0 0.0
    %1218 = vmatpush1.msra.mxu0 0.0
    %1219 = vmatprep.subr.mxu0 0.0
    %1220 = vmatpush1.msra.mxu0 0.0
    %1221 = vmatprep.subr.mxu0 0.0
    %1222 = vmatpush1.msra.mxu0 0.0
    %1223 = vmatprep.subr.mxu0 0.0
    %1224 = vmatpush1.msra.mxu0 0.0
    %1225 = vmatprep.subr.mxu0 0.0
    %1226 = vmatpush1.msra.mxu0 0.0
    %1227 = vmatprep.subr.mxu0 0.0
    %1228 = vmatpush1.msra.mxu0 0.0
    %1229 = vmatprep.subr.mxu0 0.0
    %1230 = vmatpush1.msra.mxu0 0.0
    %1231 = vmatprep.subr.mxu0 0.0
    %1232 = vmatpush1.msra.mxu0 0.0
    %1233 = vmatprep.subr.mxu0 0.0
    %1234 = vmatpush1.msra.mxu0 0.0
    %1235 = vmatprep.subr.mxu0 0.0
    %1236 = vmatpush1.msra.mxu0 0.0
    %1237 = vmatprep.subr.mxu0 0.0
    %1238 = vmatpush1.msra.mxu0 0.0
    %1239 = vmatprep.subr.mxu0 0.0
    %1240 = vmatpush1.msra.mxu0 0.0
    %1241 = vmatprep.subr.mxu0 0.0
    %1242 = vmatpush1.msra.mxu0 0.0
    %1243 = vmatprep.subr.mxu0 0.0
    %1244 = vmatpush1.msra.mxu0 0.0
    %1245 = vmatprep.subr.mxu0 0.0
    %1246 = vmatpush1.msra.mxu0 0.0
    %1247 = vmatprep.subr.mxu0 0.0
    %1248 = vmatpush1.msra.mxu0 0.0
    %1249 = vmatprep.subr.mxu0 0.0
    %1250 = vmatpush1.msra.mxu0 0.0
    %1251 = vmatprep.subr.mxu0 0.0
    %1252 = vmatpush1.msra.mxu0 0.0
    %1253 = vmatprep.subr.mxu0 0.0
    %1254 = vmatpush1.msra.mxu0 0.0
    %1255 = vmatprep.subr.mxu0 0.0
    %1256 = vmatpush1.msra.mxu0 0.0
    %1257 = vmatprep.subr.mxu0 0.0
    %1258 = vmatpush1.msra.mxu0 0.0
    %1259 = vmatprep.subr.mxu0 0.0
    %1260 = vmatpush1.msra.mxu0 0.0
    %1261 = vmatprep.subr.mxu0 0.0
    %1262 = vmatpush1.msra.mxu0 0.0
    %1263 = vmatprep.subr.mxu0 0.0
    %1264 = vmatpush1.msra.mxu0 0.0
    %1265 = vmatprep.subr.mxu0 0.0
    %1266 = vmatpush1.msra.mxu0 0.0
    %1267 = vmatprep.mubr.f32.mxu0 0.0
    %1268 = vmatmul.mubr.f32.gmra.mrb[0].mxu0 %v1201
    %v1269 = vpop.f32.mrb[0].mxu0
    %v1270 = vadd.f32 0.0, %v1269
    %v1271 = vpop.f32.mrb[0].mxu0
    %1272 = vdwg.mxu0
    %v1274 = vrot.slane %v1270, 2
    %v1276 = vadd.f32 %v205, %v1274
    %v1277 = vxor.u32 %v1276, 2147483648
    %v1278 = vmul.f32 %v1277, 1.442695
    %v1279 = vpow.pop %v1278
    %v1280 = vadd.f32 %v1279, 1.0
    %v1281 = vrcp.pop %v1280
    %v1282 = vmul.f32 1.0, %v1281
    %v1283 = vtanh.pop %v1276
    %v1285 = vrot.slane %v1077, 2
    %v1287 = vmul.f32 %v1282, %v1285
    %1289 = vrot.lane.b32.xlu0 %v1283, 64
    %v1290 = vpop.permute.xlu0 %1289
    %v1292 = vmul.f32 %v1282, %v1290
    %1294 = vrot.lane.b32.xlu0 %v1292, 32
    %v1295 = vpop.permute.xlu0 %1294
    %v1297 = vadd.f32 %v1287, %v1295
    %v1298 = vtanh.pop %v1297
    %1300 = vrot.lane.b32.xlu0 %v1298, 64
    %v1301 = vpop.permute.xlu0 %1300
    %v1303 = vmul.f32 %v1282, %v1301
    %1305 = vrot.lane.b32.xlu0 %v1198, 32
    %v1306 = vpop.permute.xlu0 %1305
    %1308 = vst.msk [vmem:[#allocation2 + $0x8] sm:$0x3] %vm422, %v1306
    %1310 = vrot.lane.b32.xlu0 %v1303, 64
    %v1311 = vpop.permute.xlu0 %1310
    %1313 = vst.msk [vmem:[#allocation2] sm:$0xc0] %vm428, %v1311
    %v1314 = vsel %vm221, %v1306, 0
    %1316 = vmatprep.subr.mxu0 0.0
    %1317 = vmatpush1.msra.mxu0 %v213
    %1318 = vmatprep.subr.mxu0 0.0
    %1319 = vmatpush1.msra.mxu0 %v214
    %1320 = vmatprep.subr.mxu0 0.0
    %1321 = vmatpush1.msra.mxu0 %v215
    %1322 = vmatprep.subr.mxu0 0.0
    %1323 = vmatpush1.msra.mxu0 %v216
    %1324 = vmatprep.subr.mxu0 0.0
    %1325 = vmatpush1.msra.mxu0 0.0
    %1326 = vmatprep.subr.mxu0 0.0
    %1327 = vmatpush1.msra.mxu0 0.0
    %1328 = vmatprep.subr.mxu0 0.0
    %1329 = vmatpush1.msra.mxu0 0.0
    %1330 = vmatprep.subr.mxu0 0.0
    %1331 = vmatpush1.msra.mxu0 0.0
    %1332 = vmatprep.subr.mxu0 0.0
    %1333 = vmatpush1.msra.mxu0 0.0
    %1334 = vmatprep.subr.mxu0 0.0
    %1335 = vmatpush1.msra.mxu0 0.0
    %1336 = vmatprep.subr.mxu0 0.0
    %1337 = vmatpush1.msra.mxu0 0.0
    %1338 = vmatprep.subr.mxu0 0.0
    %1339 = vmatpush1.msra.mxu0 0.0
    %1340 = vmatprep.subr.mxu0 0.0
    %1341 = vmatpush1.msra.mxu0 0.0
    %1342 = vmatprep.subr.mxu0 0.0
    %1343 = vmatpush1.msra.mxu0 0.0
    %1344 = vmatprep.subr.mxu0 0.0
    %1345 = vmatpush1.msra.mxu0 0.0
    %1346 = vmatprep.subr.mxu0 0.0
    %1347 = vmatpush1.msra.mxu0 0.0
    %1348 = vmatprep.subr.mxu0 0.0
    %1349 = vmatpush1.msra.mxu0 0.0
    %1350 = vmatprep.subr.mxu0 0.0
    %1351 = vmatpush1.msra.mxu0 0.0
    %1352 = vmatprep.subr.mxu0 0.0
    %1353 = vmatpush1.msra.mxu0 0.0
    %1354 = vmatprep.subr.mxu0 0.0
    %1355 = vmatpush1.msra.mxu0 0.0
    %1356 = vmatprep.subr.mxu0 0.0
    %1357 = vmatpush1.msra.mxu0 0.0
    %1358 = vmatprep.subr.mxu0 0.0
    %1359 = vmatpush1.msra.mxu0 0.0
    %1360 = vmatprep.subr.mxu0 0.0
    %1361 = vmatpush1.msra.mxu0 0.0
    %1362 = vmatprep.subr.mxu0 0.0
    %1363 = vmatpush1.msra.mxu0 0.0
    %1364 = vmatprep.subr.mxu0 0.0
    %1365 = vmatpush1.msra.mxu0 0.0
    %1366 = vmatprep.subr.mxu0 0.0
    %1367 = vmatpush1.msra.mxu0 0.0
    %1368 = vmatprep.subr.mxu0 0.0
    %1369 = vmatpush1.msra.mxu0 0.0
    %1370 = vmatprep.subr.mxu0 0.0
    %1371 = vmatpush1.msra.mxu0 0.0
    %1372 = vmatprep.subr.mxu0 0.0
    %1373 = vmatpush1.msra.mxu0 0.0
    %1374 = vmatprep.subr.mxu0 0.0
    %1375 = vmatpush1.msra.mxu0 0.0
    %1376 = vmatprep.subr.mxu0 0.0
    %1377 = vmatpush1.msra.mxu0 0.0
    %1378 = vmatprep.subr.mxu0 0.0
    %1379 = vmatpush1.msra.mxu0 0.0
    %1380 = vmatprep.mubr.f32.mxu0 0.0
    %1381 = vmatmul.mubr.f32.gmra.mrb[0].mxu0 %v1314
    %v1382 = vpop.f32.mrb[0].mxu0
    %v1383 = vadd.f32 0.0, %v1382
    %v1384 = vpop.f32.mrb[0].mxu0
    %1385 = vdwg.mxu0
    %v1387 = vrot.slane %v1383, 6
    %v1389 = vadd.f32 %v209, %v1387
    %v1390 = vxor.u32 %v1389, 2147483648
    %v1391 = vmul.f32 %v1390, 1.442695
    %v1392 = vpow.pop %v1391
    %v1393 = vadd.f32 %v1392, 1.0
    %v1394 = vrcp.pop %v1393
    %v1395 = vmul.f32 1.0, %v1394
    %v1396 = vtanh.pop %v1389
    %v1398 = vrot.slane %v1192, 6
    %v1400 = vmul.f32 %v1395, %v1398
    %1402 = vrot.lane.b32.xlu0 %v1396, 64
    %v1403 = vpop.permute.xlu0 %1402
    %v1405 = vmul.f32 %v1395, %v1403
    %1407 = vrot.lane.b32.xlu0 %v1405, 32
    %v1408 = vpop.permute.xlu0 %1407
    %v1410 = vadd.f32 %v1400, %v1408
    %v1411 = vtanh.pop %v1410
    %1413 = vrot.lane.b32.xlu0 %v1411, 64
    %v1414 = vpop.permute.xlu0 %1413
    %v1416 = vmul.f32 %v1395, %v1414
    %v1417 = vrot.slane %v1303, 6
    %1418 = vrot.lane.b32.xlu0 %v1417, 32
    %v1419 = vpop.permute.xlu0 %1418
    %v1420 = vsel %vm221, %v1419, 0
    %1422 = vmatprep.subr.mxu0 0.0
    %1423 = vmatpush1.msra.mxu0 %v217
    %1424 = vmatprep.subr.mxu0 0.0
    %1425 = vmatpush1.msra.mxu0 %v218
    %1426 = vmatprep.subr.mxu0 0.0
    %1427 = vmatpush1.msra.mxu0 %v219
    %1428 = vmatprep.subr.mxu0 0.0
    %1429 = vmatpush1.msra.mxu0 %v220
    %1430 = vmatprep.subr.mxu0 0.0
    %1431 = vmatpush1.msra.mxu0 0.0
    %1432 = vmatprep.subr.mxu0 0.0
    %1433 = vmatpush1.msra.mxu0 0.0
    %1434 = vmatprep.subr.mxu0 0.0
    %1435 = vmatpush1.msra.mxu0 0.0
    %1436 = vmatprep.subr.mxu0 0.0
    %1437 = vmatpush1.msra.mxu0 0.0
    %1438 = vmatprep.subr.mxu0 0.0
    %1439 = vmatpush1.msra.mxu0 0.0
    %1440 = vmatprep.subr.mxu0 0.0
    %1441 = vmatpush1.msra.mxu0 0.0
    %1442 = vmatprep.subr.mxu0 0.0
    %1443 = vmatpush1.msra.mxu0 0.0
    %1444 = vmatprep.subr.mxu0 0.0
    %1445 = vmatpush1.msra.mxu0 0.0
    %1446 = vmatprep.subr.mxu0 0.0
    %1447 = vmatpush1.msra.mxu0 0.0
    %1448 = vmatprep.subr.mxu0 0.0
    %1449 = vmatpush1.msra.mxu0 0.0
    %1450 = vmatprep.subr.mxu0 0.0
    %1451 = vmatpush1.msra.mxu0 0.0
    %1452 = vmatprep.subr.mxu0 0.0
    %1453 = vmatpush1.msra.mxu0 0.0
    %1454 = vmatprep.subr.mxu0 0.0
    %1455 = vmatpush1.msra.mxu0 0.0
    %1456 = vmatprep.subr.mxu0 0.0
    %1457 = vmatpush1.msra.mxu0 0.0
    %1458 = vmatprep.subr.mxu0 0.0
    %1459 = vmatpush1.msra.mxu0 0.0
    %1460 = vmatprep.subr.mxu0 0.0
    %1461 = vmatpush1.msra.mxu0 0.0
    %1462 = vmatprep.subr.mxu0 0.0
    %1463 = vmatpush1.msra.mxu0 0.0
    %1464 = vmatprep.subr.mxu0 0.0
    %1465 = vmatpush1.msra.mxu0 0.0
    %1466 = vmatprep.subr.mxu0 0.0
    %1467 = vmatpush1.msra.mxu0 0.0
    %1468 = vmatprep.subr.mxu0 0.0
    %1469 = vmatpush1.msra.mxu0 0.0
    %1470 = vmatprep.subr.mxu0 0.0
    %1471 = vmatpush1.msra.mxu0 0.0
    %1472 = vmatprep.subr.mxu0 0.0
    %1473 = vmatpush1.msra.mxu0 0.0
    %1474 = vmatprep.subr.mxu0 0.0
    %1475 = vmatpush1.msra.mxu0 0.0
    %1476 = vmatprep.subr.mxu0 0.0
    %1477 = vmatpush1.msra.mxu0 0.0
    %1478 = vmatprep.subr.mxu0 0.0
    %1479 = vmatpush1.msra.mxu0 0.0
    %1480 = vmatprep.subr.mxu0 0.0
    %1481 = vmatpush1.msra.mxu0 0.0
    %1482 = vmatprep.subr.mxu0 0.0
    %1483 = vmatpush1.msra.mxu0 0.0
    %1484 = vmatprep.subr.mxu0 0.0
    %1485 = vmatpush1.msra.mxu0 0.0
    %1486 = vmatprep.mubr.f32.mxu0 0.0
    %1487 = vmatmul.mubr.f32.gmra.mrb[0].mxu0 %v1420
    %v1488 = vpop.f32.mrb[0].mxu0
    %v1489 = vadd.f32 0.0, %v1488
    %v1490 = vpop.f32.mrb[0].mxu0
    %1491 = vdwg.mxu0
    %v1493 = vrot.slane %v1489, 4
    %v1495 = vadd.f32 %v205, %v1493
    %v1496 = vxor.u32 %v1495, 2147483648
    %v1497 = vmul.f32 %v1496, 1.442695
    %v1498 = vpow.pop %v1497
    %v1499 = vadd.f32 %v1498, 1.0
    %v1500 = vrcp.pop %v1499
    %v1501 = vmul.f32 1.0, %v1500
    %v1502 = vtanh.pop %v1495
    %v1504 = vrot.slane %v1297, 2
    %v1506 = vmul.f32 %v1501, %v1504
    %1508 = vrot.lane.b32.xlu0 %v1502, 64
    %v1509 = vpop.permute.xlu0 %1508
    %v1511 = vmul.f32 %v1501, %v1509
    %1513 = vrot.lane.b32.xlu0 %v1511, 32
    %v1514 = vpop.permute.xlu0 %1513
    %v1516 = vadd.f32 %v1506, %v1514
    %v1517 = vtanh.pop %v1516
    %1519 = vrot.lane.b32.xlu0 %v1517, 64
    %v1520 = vpop.permute.xlu0 %1519
    %v1522 = vmul.f32 %v1501, %v1520
    %1524 = vrot.lane.b32.xlu0 %v1416, 32
    %v1525 = vpop.permute.xlu0 %1524
    %1527 = vst.msk [vmem:[#allocation2 + $0x8] sm:$0xc] %vm643, %v1525
    %1529 = vrot.lane.b32.xlu0 %v1522, 64
    %v1530 = vpop.permute.xlu0 %1529
    %1532 = vst.msk [vmem:[#allocation2] sm:$0x30] %vm649, %v1530
    %v1533 = vrot.slane %v1416, 2
    %1534 = vrot.lane.b32.xlu0 %v1533, 32
    %v1535 = vpop.permute.xlu0 %1534
    %v1536 = vsel %vm221, %v1535, 0
    %1538 = vmatprep.subr.mxu0 0.0
    %1539 = vmatpush1.msra.mxu0 %v213
    %1540 = vmatprep.subr.mxu0 0.0
    %1541 = vmatpush1.msra.mxu0 %v214
    %1542 = vmatprep.subr.mxu0 0.0
    %1543 = vmatpush1.msra.mxu0 %v215
    %1544 = vmatprep.subr.mxu0 0.0
    %1545 = vmatpush1.msra.mxu0 %v216
    %1546 = vmatprep.subr.mxu0 0.0
    %1547 = vmatpush1.msra.mxu0 0.0
    %1548 = vmatprep.subr.mxu0 0.0
    %1549 = vmatpush1.msra.mxu0 0.0
    %1550 = vmatprep.subr.mxu0 0.0
    %1551 = vmatpush1.msra.mxu0 0.0
    %1552 = vmatprep.subr.mxu0 0.0
    %1553 = vmatpush1.msra.mxu0 0.0
    %1554 = vmatprep.subr.mxu0 0.0
    %1555 = vmatpush1.msra.mxu0 0.0
    %1556 = vmatprep.subr.mxu0 0.0
    %1557 = vmatpush1.msra.mxu0 0.0
    %1558 = vmatprep.subr.mxu0 0.0
    %1559 = vmatpush1.msra.mxu0 0.0
    %1560 = vmatprep.subr.mxu0 0.0
    %1561 = vmatpush1.msra.mxu0 0.0
    %1562 = vmatprep.subr.mxu0 0.0
    %1563 = vmatpush1.msra.mxu0 0.0
    %1564 = vmatprep.subr.mxu0 0.0
    %1565 = vmatpush1.msra.mxu0 0.0
    %1566 = vmatprep.subr.mxu0 0.0
    %1567 = vmatpush1.msra.mxu0 0.0
    %1568 = vmatprep.subr.mxu0 0.0
    %1569 = vmatpush1.msra.mxu0 0.0
    %1570 = vmatprep.subr.mxu0 0.0
    %1571 = vmatpush1.msra.mxu0 0.0
    %1572 = vmatprep.subr.mxu0 0.0
    %1573 = vmatpush1.msra.mxu0 0.0
    %1574 = vmatprep.subr.mxu0 0.0
    %1575 = vmatpush1.msra.mxu0 0.0
    %1576 = vmatprep.subr.mxu0 0.0
    %1577 = vmatpush1.msra.mxu0 0.0
    %1578 = vmatprep.subr.mxu0 0.0
    %1579 = vmatpush1.msra.mxu0 0.0
    %1580 = vmatprep.subr.mxu0 0.0
    %1581 = vmatpush1.msra.mxu0 0.0
    %1582 = vmatprep.subr.mxu0 0.0
    %1583 = vmatpush1.msra.mxu0 0.0
    %1584 = vmatprep.subr.mxu0 0.0
    %1585 = vmatpush1.msra.mxu0 0.0
    %1586 = vmatprep.subr.mxu0 0.0
    %1587 = vmatpush1.msra.mxu0 0.0
    %1588 = vmatprep.subr.mxu0 0.0
    %1589 = vmatpush1.msra.mxu0 0.0
    %1590 = vmatprep.subr.mxu0 0.0
    %1591 = vmatpush1.msra.mxu0 0.0
    %1592 = vmatprep.subr.mxu0 0.0
    %1593 = vmatpush1.msra.mxu0 0.0
    %1594 = vmatprep.subr.mxu0 0.0
    %1595 = vmatpush1.msra.mxu0 0.0
    %1596 = vmatprep.subr.mxu0 0.0
    %1597 = vmatpush1.msra.mxu0 0.0
    %1598 = vmatprep.subr.mxu0 0.0
    %1599 = vmatpush1.msra.mxu0 0.0
    %1600 = vmatprep.subr.mxu0 0.0
    %1601 = vmatpush1.msra.mxu0 0.0
    %1602 = vmatprep.mubr.f32.mxu0 0.0
    %1603 = vmatmul.mubr.f32.gmra.mrb[0].mxu0 %v1536
    %v1604 = vpop.f32.mrb[0].mxu0
    %v1605 = vadd.f32 0.0, %v1604
    %v1606 = vpop.f32.mrb[0].mxu0
    %1607 = vdwg.mxu0
    %v1609 = vrot.slane %v1605, 4
    %v1611 = vadd.f32 %v209, %v1609
    %v1612 = vxor.u32 %v1611, 2147483648
    %v1613 = vmul.f32 %v1612, 1.442695
    %v1614 = vpow.pop %v1613
    %v1615 = vadd.f32 %v1614, 1.0
    %v1616 = vrcp.pop %v1615
    %v1617 = vmul.f32 1.0, %v1616
    %v1618 = vtanh.pop %v1611
    %v1620 = vrot.slane %v1410, 6
    %v1622 = vmul.f32 %v1617, %v1620
    %1624 = vrot.lane.b32.xlu0 %v1618, 64
    %v1625 = vpop.permute.xlu0 %1624
    %v1627 = vmul.f32 %v1617, %v1625
    %1629 = vrot.lane.b32.xlu0 %v1627, 32
    %v1630 = vpop.permute.xlu0 %1629
    %v1632 = vadd.f32 %v1622, %v1630
    %v1633 = vtanh.pop %v1632
    %1635 = vrot.lane.b32.xlu0 %v1633, 64
    %v1636 = vpop.permute.xlu0 %1635
    %v1638 = vmul.f32 %v1617, %v1636
    %v1639 = vrot.slane %v1522, 4
    %1640 = vrot.lane.b32.xlu0 %v1639, 32
    %v1641 = vpop.permute.xlu0 %1640
    %v1642 = vsel %vm221, %v1641, 0
    %1644 = vmatprep.subr.mxu0 0.0
    %1645 = vmatpush1.msra.mxu0 %v217
    %1646 = vmatprep.subr.mxu0 0.0
    %1647 = vmatpush1.msra.mxu0 %v218
    %1648 = vmatprep.subr.mxu0 0.0
    %1649 = vmatpush1.msra.mxu0 %v219
    %1650 = vmatprep.subr.mxu0 0.0
    %1651 = vmatpush1.msra.mxu0 %v220
    %1652 = vmatprep.subr.mxu0 0.0
    %1653 = vmatpush1.msra.mxu0 0.0
    %1654 = vmatprep.subr.mxu0 0.0
    %1655 = vmatpush1.msra.mxu0 0.0
    %1656 = vmatprep.subr.mxu0 0.0
    %1657 = vmatpush1.msra.mxu0 0.0
    %1658 = vmatprep.subr.mxu0 0.0
    %1659 = vmatpush1.msra.mxu0 0.0
    %1660 = vmatprep.subr.mxu0 0.0
    %1661 = vmatpush1.msra.mxu0 0.0
    %1662 = vmatprep.subr.mxu0 0.0
    %1663 = vmatpush1.msra.mxu0 0.0
    %1664 = vmatprep.subr.mxu0 0.0
    %1665 = vmatpush1.msra.mxu0 0.0
    %1666 = vmatprep.subr.mxu0 0.0
    %1667 = vmatpush1.msra.mxu0 0.0
    %1668 = vmatprep.subr.mxu0 0.0
    %1669 = vmatpush1.msra.mxu0 0.0
    %1670 = vmatprep.subr.mxu0 0.0
    %1671 = vmatpush1.msra.mxu0 0.0
    %1672 = vmatprep.subr.mxu0 0.0
    %1673 = vmatpush1.msra.mxu0 0.0
    %1674 = vmatprep.subr.mxu0 0.0
    %1675 = vmatpush1.msra.mxu0 0.0
    %1676 = vmatprep.subr.mxu0 0.0
    %1677 = vmatpush1.msra.mxu0 0.0
    %1678 = vmatprep.subr.mxu0 0.0
    %1679 = vmatpush1.msra.mxu0 0.0
    %1680 = vmatprep.subr.mxu0 0.0
    %1681 = vmatpush1.msra.mxu0 0.0
    %1682 = vmatprep.subr.mxu0 0.0
    %1683 = vmatpush1.msra.mxu0 0.0
    %1684 = vmatprep.subr.mxu0 0.0
    %1685 = vmatpush1.msra.mxu0 0.0
    %1686 = vmatprep.subr.mxu0 0.0
    %1687 = vmatpush1.msra.mxu0 0.0
    %1688 = vmatprep.subr.mxu0 0.0
    %1689 = vmatpush1.msra.mxu0 0.0
    %1690 = vmatprep.subr.mxu0 0.0
    %1691 = vmatpush1.msra.mxu0 0.0
    %1692 = vmatprep.subr.mxu0 0.0
    %1693 = vmatpush1.msra.mxu0 0.0
    %1694 = vmatprep.subr.mxu0 0.0
    %1695 = vmatpush1.msra.mxu0 0.0
    %1696 = vmatprep.subr.mxu0 0.0
    %1697 = vmatpush1.msra.mxu0 0.0
    %1698 = vmatprep.subr.mxu0 0.0
    %1699 = vmatpush1.msra.mxu0 0.0
    %1700 = vmatprep.subr.mxu0 0.0
    %1701 = vmatpush1.msra.mxu0 0.0
    %1702 = vmatprep.subr.mxu0 0.0
    %1703 = vmatpush1.msra.mxu0 0.0
    %1704 = vmatprep.subr.mxu0 0.0
    %1705 = vmatpush1.msra.mxu0 0.0
    %1706 = vmatprep.subr.mxu0 0.0
    %1707 = vmatpush1.msra.mxu0 0.0
    %1708 = vmatprep.mubr.f32.mxu0 0.0
    %1709 = vmatmul.mubr.f32.gmra.mrb[0].mxu0 %v1642
    %v1710 = vpop.f32.mrb[0].mxu0
    %v1711 = vadd.f32 0.0, %v1710
    %v1712 = vpop.f32.mrb[0].mxu0
    %1713 = vdwg.mxu0
    %v1715 = vrot.slane %v1711, 6
    %v1717 = vadd.f32 %v205, %v1715
    %v1718 = vxor.u32 %v1717, 2147483648
    %v1719 = vmul.f32 %v1718, 1.442695
    %v1720 = vpow.pop %v1719
    %v1721 = vadd.f32 %v1720, 1.0
    %v1722 = vrcp.pop %v1721
    %v1723 = vmul.f32 1.0, %v1722
    %v1724 = vtanh.pop %v1717
    %v1726 = vrot.slane %v1516, 2
    %v1728 = vmul.f32 %v1723, %v1726
    %1730 = vrot.lane.b32.xlu0 %v1724, 64
    %v1731 = vpop.permute.xlu0 %1730
    %v1733 = vmul.f32 %v1723, %v1731
    %1735 = vrot.lane.b32.xlu0 %v1733, 32
    %v1736 = vpop.permute.xlu0 %1735
    %v1738 = vadd.f32 %v1728, %v1736
    %v1739 = vtanh.pop %v1738
    %1741 = vrot.lane.b32.xlu0 %v1739, 64
    %v1742 = vpop.permute.xlu0 %1741
    %v1744 = vmul.f32 %v1723, %v1742
    %1746 = vrot.lane.b32.xlu0 %v1638, 32
    %v1747 = vpop.permute.xlu0 %1746
    %1749 = vst.msk [vmem:[#allocation2 + $0x8] sm:$0x30] %vm867, %v1747
    %1751 = vrot.lane.b32.xlu0 %v1744, 64
    %v1752 = vpop.permute.xlu0 %1751
    %1754 = vst.msk [vmem:[#allocation2] sm:$0xc] %vm873, %v1752
    %v1755 = vrot.slane %v1638, 4
    %1756 = vrot.lane.b32.xlu0 %v1755, 32
    %v1757 = vpop.permute.xlu0 %1756
    %v1758 = vsel %vm221, %v1757, 0
    %1760 = vmatprep.subr.mxu0 0.0
    %1761 = vmatpush1.msra.mxu0 %v213
    %1762 = vmatprep.subr.mxu0 0.0
    %1763 = vmatpush1.msra.mxu0 %v214
    %1764 = vmatprep.subr.mxu0 0.0
    %1765 = vmatpush1.msra.mxu0 %v215
    %1766 = vmatprep.subr.mxu0 0.0
    %1767 = vmatpush1.msra.mxu0 %v216
    %1768 = vmatprep.subr.mxu0 0.0
    %1769 = vmatpush1.msra.mxu0 0.0
    %1770 = vmatprep.subr.mxu0 0.0
    %1771 = vmatpush1.msra.mxu0 0.0
    %1772 = vmatprep.subr.mxu0 0.0
    %1773 = vmatpush1.msra.mxu0 0.0
    %1774 = vmatprep.subr.mxu0 0.0
    %1775 = vmatpush1.msra.mxu0 0.0
    %1776 = vmatprep.subr.mxu0 0.0
    %1777 = vmatpush1.msra.mxu0 0.0
    %1778 = vmatprep.subr.mxu0 0.0
    %1779 = vmatpush1.msra.mxu0 0.0
    %1780 = vmatprep.subr.mxu0 0.0
    %1781 = vmatpush1.msra.mxu0 0.0
    %1782 = vmatprep.subr.mxu0 0.0
    %1783 = vmatpush1.msra.mxu0 0.0
    %1784 = vmatprep.subr.mxu0 0.0
    %1785 = vmatpush1.msra.mxu0 0.0
    %1786 = vmatprep.subr.mxu0 0.0
    %1787 = vmatpush1.msra.mxu0 0.0
    %1788 = vmatprep.subr.mxu0 0.0
    %1789 = vmatpush1.msra.mxu0 0.0
    %1790 = vmatprep.subr.mxu0 0.0
    %1791 = vmatpush1.msra.mxu0 0.0
    %1792 = vmatprep.subr.mxu0 0.0
    %1793 = vmatpush1.msra.mxu0 0.0
    %1794 = vmatprep.subr.mxu0 0.0
    %1795 = vmatpush1.msra.mxu0 0.0
    %1796 = vmatprep.subr.mxu0 0.0
    %1797 = vmatpush1.msra.mxu0 0.0
    %1798 = vmatprep.subr.mxu0 0.0
    %1799 = vmatpush1.msra.mxu0 0.0
    %1800 = vmatprep.subr.mxu0 0.0
    %1801 = vmatpush1.msra.mxu0 0.0
    %1802 = vmatprep.subr.mxu0 0.0
    %1803 = vmatpush1.msra.mxu0 0.0
    %1804 = vmatprep.subr.mxu0 0.0
    %1805 = vmatpush1.msra.mxu0 0.0
    %1806 = vmatprep.subr.mxu0 0.0
    %1807 = vmatpush1.msra.mxu0 0.0
    %1808 = vmatprep.subr.mxu0 0.0
    %1809 = vmatpush1.msra.mxu0 0.0
    %1810 = vmatprep.subr.mxu0 0.0
    %1811 = vmatpush1.msra.mxu0 0.0
    %1812 = vmatprep.subr.mxu0 0.0
    %1813 = vmatpush1.msra.mxu0 0.0
    %1814 = vmatprep.subr.mxu0 0.0
    %1815 = vmatpush1.msra.mxu0 0.0
    %1816 = vmatprep.subr.mxu0 0.0
    %1817 = vmatpush1.msra.mxu0 0.0
    %1818 = vmatprep.subr.mxu0 0.0
    %1819 = vmatpush1.msra.mxu0 0.0
    %1820 = vmatprep.subr.mxu0 0.0
    %1821 = vmatpush1.msra.mxu0 0.0
    %1822 = vmatprep.subr.mxu0 0.0
    %1823 = vmatpush1.msra.mxu0 0.0
    %1824 = vmatprep.mubr.f32.mxu0 0.0
    %1825 = vmatmul.mubr.f32.gmra.mrb[0].mxu0 %v1758
    %v1826 = vpop.f32.mrb[0].mxu0
    %v1827 = vadd.f32 0.0, %v1826
    %v1828 = vpop.f32.mrb[0].mxu0
    %1829 = vdwg.mxu0
    %v1831 = vrot.slane %v1827, 2
    %v1833 = vadd.f32 %v209, %v1831
    %v1834 = vxor.u32 %v1833, 2147483648
    %v1835 = vmul.f32 %v1834, 1.442695
    %v1836 = vpow.pop %v1835
    %v1837 = vadd.f32 %v1836, 1.0
    %v1838 = vrcp.pop %v1837
    %v1839 = vmul.f32 1.0, %v1838
    %v1840 = vtanh.pop %v1833
    %v1842 = vrot.slane %v1632, 6
    %v1844 = vmul.f32 %v1839, %v1842
    %1846 = vrot.lane.b32.xlu0 %v1840, 64
    %v1847 = vpop.permute.xlu0 %1846
    %v1849 = vmul.f32 %v1839, %v1847
    %1851 = vrot.lane.b32.xlu0 %v1849, 32
    %v1852 = vpop.permute.xlu0 %1851
    %v1854 = vadd.f32 %v1844, %v1852
    %v1855 = vtanh.pop %v1854
    %1857 = vrot.lane.b32.xlu0 %v1855, 64
    %v1858 = vpop.permute.xlu0 %1857
    %v1860 = vmul.f32 %v1839, %v1858
    %v1861 = vrot.slane %v1744, 2
    %1862 = vrot.lane.b32.xlu0 %v1861, 32
    %v1863 = vpop.permute.xlu0 %1862
    %v1864 = vsel %vm221, %v1863, 0
    %1866 = vmatprep.subr.mxu0 0.0
    %1867 = vmatpush1.msra.mxu0 %v217
    %1868 = vmatprep.subr.mxu0 0.0
    %1869 = vmatpush1.msra.mxu0 %v218
    %1870 = vmatprep.subr.mxu0 0.0
    %1871 = vmatpush1.msra.mxu0 %v219
    %1872 = vmatprep.subr.mxu0 0.0
    %1873 = vmatpush1.msra.mxu0 %v220
    %1874 = vmatprep.subr.mxu0 0.0
    %1875 = vmatpush1.msra.mxu0 0.0
    %1876 = vmatprep.subr.mxu0 0.0
    %1877 = vmatpush1.msra.mxu0 0.0
    %1878 = vmatprep.subr.mxu0 0.0
    %1879 = vmatpush1.msra.mxu0 0.0
    %1880 = vmatprep.subr.mxu0 0.0
    %1881 = vmatpush1.msra.mxu0 0.0
    %1882 = vmatprep.subr.mxu0 0.0
    %1883 = vmatpush1.msra.mxu0 0.0
    %1884 = vmatprep.subr.mxu0 0.0
    %1885 = vmatpush1.msra.mxu0 0.0
    %1886 = vmatprep.subr.mxu0 0.0
    %1887 = vmatpush1.msra.mxu0 0.0
    %1888 = vmatprep.subr.mxu0 0.0
    %1889 = vmatpush1.msra.mxu0 0.0
    %1890 = vmatprep.subr.mxu0 0.0
    %1891 = vmatpush1.msra.mxu0 0.0
    %1892 = vmatprep.subr.mxu0 0.0
    %1893 = vmatpush1.msra.mxu0 0.0
    %1894 = vmatprep.subr.mxu0 0.0
    %1895 = vmatpush1.msra.mxu0 0.0
    %1896 = vmatprep.subr.mxu0 0.0
    %1897 = vmatpush1.msra.mxu0 0.0
    %1898 = vmatprep.subr.mxu0 0.0
    %1899 = vmatpush1.msra.mxu0 0.0
    %1900 = vmatprep.subr.mxu0 0.0
    %1901 = vmatpush1.msra.mxu0 0.0
    %1902 = vmatprep.subr.mxu0 0.0
    %1903 = vmatpush1.msra.mxu0 0.0
    %1904 = vmatprep.subr.mxu0 0.0
    %1905 = vmatpush1.msra.mxu0 0.0
    %1906 = vmatprep.subr.mxu0 0.0
    %1907 = vmatpush1.msra.mxu0 0.0
    %1908 = vmatprep.subr.mxu0 0.0
    %1909 = vmatpush1.msra.mxu0 0.0
    %1910 = vmatprep.subr.mxu0 0.0
    %1911 = vmatpush1.msra.mxu0 0.0
    %1912 = vmatprep.subr.mxu0 0.0
    %1913 = vmatpush1.msra.mxu0 0.0
    %1914 = vmatprep.subr.mxu0 0.0
    %1915 = vmatpush1.msra.mxu0 0.0
    %1916 = vmatprep.subr.mxu0 0.0
    %1917 = vmatpush1.msra.mxu0 0.0
    %1918 = vmatprep.subr.mxu0 0.0
    %1919 = vmatpush1.msra.mxu0 0.0
    %1920 = vmatprep.subr.mxu0 0.0
    %1921 = vmatpush1.msra.mxu0 0.0
    %1922 = vmatprep.subr.mxu0 0.0
    %1923 = vmatpush1.msra.mxu0 0.0
    %1924 = vmatprep.subr.mxu0 0.0
    %1925 = vmatpush1.msra.mxu0 0.0
    %1926 = vmatprep.subr.mxu0 0.0
    %1927 = vmatpush1.msra.mxu0 0.0
    %1928 = vmatprep.subr.mxu0 0.0
    %1929 = vmatpush1.msra.mxu0 0.0
    %1930 = vmatprep.mubr.f32.mxu0 0.0
    %1931 = vmatmul.mubr.f32.gmra.mrb[0].mxu0 %v1864
    %v1932 = vpop.f32.mrb[0].mxu0
    %v1933 = vadd.f32 0.0, %v1932
    %v1934 = vpop.f32.mrb[0].mxu0
    %1935 = vdwg.mxu0
    %v1936 = vadd.f32 %v205, %v1933
    %v1937 = vxor.u32 %v1936, 2147483648
    %v1938 = vmul.f32 %v1937, 1.442695
    %v1939 = vpow.pop %v1938
    %v1940 = vadd.f32 %v1939, 1.0
    %v1941 = vrcp.pop %v1940
    %v1942 = vmul.f32 1.0, %v1941
    %v1943 = vtanh.pop %v1936
    %v1945 = vrot.slane %v1738, 2
    %v1947 = vmul.f32 %v1942, %v1945
    %1949 = vrot.lane.b32.xlu0 %v1943, 64
    %v1950 = vpop.permute.xlu0 %1949
    %v1952 = vmul.f32 %v1942, %v1950
    %1954 = vrot.lane.b32.xlu0 %v1952, 32
    %v1955 = vpop.permute.xlu0 %1954
    %v1957 = vadd.f32 %v1947, %v1955
    %v1958 = vtanh.pop %v1957
    %1960 = vrot.lane.b32.xlu0 %v1958, 64
    %v1961 = vpop.permute.xlu0 %1960
    %v1963 = vmul.f32 %v1942, %v1961
    %1965 = vrot.lane.b32.xlu0 %v1860, 32
    %v1966 = vpop.permute.xlu0 %1965
    %1968 = vst.msk [vmem:[#allocation2 + $0x8] sm:$0xc0] %vm1088, %v1966
    %1970 = vrot.lane.b32.xlu0 %v1963, 64
    %v1971 = vpop.permute.xlu0 %1970
    %1973 = vst.msk [vmem:[#allocation2] sm:$0x3] %vm1094, %v1971
    %v1974 = vld [vmem:[#allocation2] sm:$0xff]
    %v1975 = vld [vmem:[#allocation2 + $0x8] sm:$0xff]
    %v1976 = vld [vmem:[#allocation11] sm:$0xff]
    %v1977 = vld [vmem:[#allocation11 + $0x8] sm:$0xff]
    %v1978 = vld [vmem:[#allocation11 + $0x10] sm:$0xff]
    %v1979 = vld [vmem:[#allocation11 + $0x18] sm:$0xff]
    %v1980 = vld [vmem:[#allocation11 + $0x20] sm:$0xff]
    %v1981 = vld [vmem:[#allocation11 + $0x28] sm:$0xff]
    %v1982 = vld [vmem:[#allocation11 + $0x30] sm:$0xff]
    %v1983 = vld [vmem:[#allocation11 + $0x38] sm:$0xff]
    %v1984 = vld [vmem:[%s6] sm:$0x1]
    %v1986 = vlaneseq
    %v1987 = vshrl.u32 %v1986, 7
    %v1988 = vsub.s32 0, %v1987
    %v1989 = vrot.slane %v1984, %v1988
    %vm1991 = vcmask 523264
    %v1993 = vsel %vm1991, %v1974, 0
    %v1996 = vsel %vm1991, %v1975, 0
    %1998 = vmatprep.subr.mxu0 0.0
    %1999 = vmatpush1.msra.mxu0 %v1976
    %2000 = vmatprep.subr.mxu0 0.0
    %2001 = vmatpush1.msra.mxu0 %v1977
    %2002 = vmatprep.subr.mxu0 0.0
    %2003 = vmatpush1.msra.mxu0 %v1978
    %2004 = vmatprep.subr.mxu0 0.0
    %2005 = vmatpush1.msra.mxu0 %v1979
    %2006 = vmatprep.subr.mxu0 0.0
    %2007 = vmatpush1.msra.mxu0 %v1980
    %2008 = vmatprep.subr.mxu0 0.0
    %2009 = vmatpush1.msra.mxu0 %v1981
    %2010 = vmatprep.subr.mxu0 0.0
    %2011 = vmatpush1.msra.mxu0 %v1982
    %2012 = vmatprep.subr.mxu0 0.0
    %2013 = vmatpush1.msra.mxu0 %v1983
    %2014 = vmatprep.subr.mxu0 0.0
    %2015 = vmatpush1.msra.mxu0 0.0
    %2016 = vmatprep.subr.mxu0 0.0
    %2017 = vmatpush1.msra.mxu0 0.0
    %2018 = vmatprep.subr.mxu0 0.0
    %2019 = vmatpush1.msra.mxu0 0.0
    %2020 = vmatprep.subr.mxu0 0.0
    %2021 = vmatpush1.msra.mxu0 0.0
    %2022 = vmatprep.subr.mxu0 0.0
    %2023 = vmatpush1.msra.mxu0 0.0
    %2024 = vmatprep.subr.mxu0 0.0
    %2025 = vmatpush1.msra.mxu0 0.0
    %2026 = vmatprep.subr.mxu0 0.0
    %2027 = vmatpush1.msra.mxu0 0.0
    %2028 = vmatprep.subr.mxu0 0.0
    %2029 = vmatpush1.msra.mxu0 0.0
    %2030 = vmatprep.subr.mxu0 0.0
    %2031 = vmatpush1.msra.mxu0 0.0
    %2032 = vmatprep.subr.mxu0 0.0
    %2033 = vmatpush1.msra.mxu0 0.0
    %2034 = vmatprep.subr.mxu0 0.0
    %2035 = vmatpush1.msra.mxu0 0.0
    %2036 = vmatprep.subr.mxu0 0.0
    %2037 = vmatpush1.msra.mxu0 0.0
    %2038 = vmatprep.subr.mxu0 0.0
    %2039 = vmatpush1.msra.mxu0 0.0
    %2040 = vmatprep.subr.mxu0 0.0
    %2041 = vmatpush1.msra.mxu0 0.0
    %2042 = vmatprep.subr.mxu0 0.0
    %2043 = vmatpush1.msra.mxu0 0.0
    %2044 = vmatprep.subr.mxu0 0.0
    %2045 = vmatpush1.msra.mxu0 0.0
    %2046 = vmatprep.subr.mxu0 0.0
    %2047 = vmatpush1.msra.mxu0 0.0
    %2048 = vmatprep.subr.mxu0 0.0
    %2049 = vmatpush1.msra.mxu0 0.0
    %2050 = vmatprep.subr.mxu0 0.0
    %2051 = vmatpush1.msra.mxu0 0.0
    %2052 = vmatprep.subr.mxu0 0.0
    %2053 = vmatpush1.msra.mxu0 0.0
    %2054 = vmatprep.subr.mxu0 0.0
    %2055 = vmatpush1.msra.mxu0 0.0
    %2056 = vmatprep.subr.mxu0 0.0
    %2057 = vmatpush1.msra.mxu0 0.0
    %2058 = vmatprep.subr.mxu0 0.0
    %2059 = vmatpush1.msra.mxu0 0.0
    %2060 = vmatprep.subr.mxu0 0.0
    %2061 = vmatpush1.msra.mxu0 0.0
    %2062 = vmatprep.mubr.f32.mxu0 0.0
    %2063 = vmatmul.mubr.f32.gmra.mrb[0].mxu0 %v1993
    %v2064 = vpop.f32.mrb[0].mxu0
    %v2065 = vadd.f32 %v1989, %v2064
    %v2066 = vpop.f32.mrb[0].mxu0
    %2067 = vmatprep.mubr.f32.mxu0 0.0
    %2068 = vmatmul.mubr.f32.gmra.mrb[0].mxu0 %v1996
    %v2069 = vpop.f32.mrb[0].mxu0
    %v2070 = vadd.f32 %v1989, %v2069
    %v2071 = vpop.f32.mrb[0].mxu0
    %2072 = vdwg.mxu0
    %2073 = vst [vmem:[#allocation12] sm:$0xff] %v2065
    %2074 = vst [vmem:[#allocation12 + $0x8] sm:$0xff] %v2070
    // Predicated region
    $region50: #{tpu_custom_call.1} parent=1 // pred_check
      _
    $region51: #{tpu_custom_call.1} parent=1 // pred_check_branch
      %2076 = sbr.rel (0) target = $region53
    $region52: #{tpu_custom_call.1} parent=1 // pred_region
      %s2078 = ssub.s32 256, 256
      %2079 = vsyncadd [#allocation5], %s2078
      %s2080 = sshll.u32 [#allocation12], 4
      %s2081 = int_to_ptr.vmem [resolvable:$true] %s2080
      %2086 = dma.vmem_to_hbm [thread:$0]  %s2081, 256, %s7, [#allocation5], 128, 128, 8
    $region53: #{tpu_custom_call.1} parent=1 // pred_fallthru
      _
    // Predicated region
    $region54: #{tpu_custom_call.1} parent=1 // pred_check
      _
    $region55: #{tpu_custom_call.1} parent=1 // pred_check_branch
      %2088 = sbr.rel (0) target = $region57
    $region56: #{tpu_custom_call.1} parent=1 // pred_region
      %2089 = dma.done [#allocation5], 256
    $region57: #{tpu_custom_call.1} parent=1 // pred_fallthru
      _
    %2090 = vsyncpa [#allocation4], 1
    %2091 = vsyncpa [#allocation7], 1
    %2092 = vsyncpa [#allocation10], 1
    %2093 = vsyncpa [#allocation5], 1

</llo_original>
